<compile_context>
chip_gen: v5e
topology: v5e:2x2
jax: 0.10.0
libtpu: 0.0.40
codegen_flags: <defaults>
</compile_context>

<pallas_src>
import functools

import jax
import jax.numpy as jnp
from jax.experimental import pallas as pl
from jax.experimental.pallas import tpu as pltpu


# ----------------------------- fused Pallas kernel --------------------------

def _fused_cnn_kernel(x_ref, b1e_ref, b1o_ref, b1c_ref,
                      b2e_ref, b2o_ref, b2c_ref,
                      w1p_ref, fc1b_ref, fc2w_ref, fc2b_ref, clsw_ref, clsb_ref,
                      out_ref, h1_ref, *, n_batch):
    f32 = jnp.float32
    n = n_batch

    # --- conv1 (1->6, 5x5 VALID): 5 row-shifted banded matmuls per ow-parity ---
    # x rows = h*n + b (h-major), cols = w (28).  Output rows = oh*n + b, oh<24.
    r1 = 24 * n
    even = odd = None
    for i in range(5):                                   # static unroll, 5 rows
        xs = x_ref[i * n:i * n + r1, :]                               # (24n, 28)
        e = jnp.dot(xs, b1e_ref[i], preferred_element_type=f32)       # (24n, 72)
        o = jnp.dot(xs, b1o_ref[i], preferred_element_type=f32)
        even = e if even is None else even + e
        odd = o if odd is None else odd + o
    # bias + ReLU + pool-over-w fused (pool over w == max of the two parities).
    a1 = jnp.maximum(jnp.maximum(even, odd) + b1c_ref[...], 0.0)      # (24n, 72)

    # pool over h: h-major layout -> contiguous n-row block maxima.
    for k in range(12):
        h1_ref[k * n:(k + 1) * n, :] = jnp.maximum(
            a1[(2 * k) * n:(2 * k + 1) * n, :],
            a1[(2 * k + 1) * n:(2 * k + 2) * n, :])                   # (12n, 72)

    # --- conv2 (6->16, 5x5 VALID): same banded structure ---
    r2 = 8 * n
    even = odd = None
    for i in range(5):
        hs = h1_ref[i * n:i * n + r2, :]                              # (8n, 72)
        e = jnp.dot(hs, b2e_ref[i], preferred_element_type=f32)       # (8n, 64)
        o = jnp.dot(hs, b2o_ref[i], preferred_element_type=f32)
        even = e if even is None else even + e
        odd = o if odd is None else odd + o
    a2 = jnp.maximum(jnp.maximum(even, odd) + b2c_ref[...], 0.0)      # (8n, 64)

    # --- pool over h + fc1 fused: each pooled row ph is a contiguous n-row block ---
    fc1 = None
    for ph in range(4):
        rows = jnp.maximum(a2[(2 * ph) * n:(2 * ph + 1) * n, :],
                           a2[(2 * ph + 1) * n:(2 * ph + 2) * n, :])  # (n, 64)
        t = jnp.dot(rows, w1p_ref[ph], preferred_element_type=f32)    # (n, H0)
        fc1 = t if fc1 is None else fc1 + t
    fc1 = jnp.maximum(fc1 + fc1b_ref[...], 0.0)

    # --- fc2 + classifier (stay in vregs) ---
    fc2 = jnp.maximum(jnp.dot(fc1, fc2w_ref[...], preferred_element_type=f32)
                      + fc2b_ref[...], 0.0)                           # (n, H1)
    logits = jnp.dot(fc2, clsw_ref[...], preferred_element_type=f32) + clsb_ref[...]
    out_ref[...] = logits.astype(out_ref.dtype)


# ------------------------------- wrappers ------------------------------------

def _full_spec(shape):
    zeros = (0,) * len(shape)
    return pl.BlockSpec(shape, lambda i, _z=zeros: _z)


def _band_conv_weights(w, b, w_in):
    """Torch conv weights (OC, IC, 5, 5) -> row-shift banded matmul weights.

    Be[i, ic*w_in + wi, oc*OWh + pw] = w[oc, ic, i, j]  where  wi == 2*pw + j
    Bo[i, ...]                                          where  wi == 2*pw + 1 + j
    bc[0, oc*OWh + pw] = b[oc]
    so that sum_i X[rows shifted by i] @ B*[i] computes the VALID conv, already
    split into even/odd output columns (ow parity) for the 2x2 pool over w.
    """
    oc_n, ic_n, kh, kw = w.shape
    ow_n = w_in - kw + 1
    owh = ow_n // 2
    wi = jnp.arange(w_in)[:, None, None]
    ow = jnp.arange(ow_n)[None, :, None]
    jj = jnp.arange(kw)[None, None, :]
    ind = (wi == ow + jj).astype(w.dtype)                 # (w_in, OW, KW)
    bmat = jnp.einsum('aoj,cbij->ibaco', ind, w)          # (KH, IC, w_in, OC, OW)
    be = bmat[..., 0::2].reshape(kh, ic_n * w_in, oc_n * owh)
    bo = bmat[..., 1::2].reshape(kh, ic_n * w_in, oc_n * owh)
    bc = jnp.broadcast_to(b[:, None], (oc_n, owh)).reshape(1, oc_n * owh)
    return be, bo, bc


def forward(params, x):
    """x: (N, 1, 28, 28) float32 -> logits (N, 10)."""
    n = x.shape[0]

    # ---- weight-only preprocessing (tiny; constant-foldable / hoistable) ----
    b1e, b1o, b1c = _band_conv_weights(params['conv1_w'], params['conv1_b'], 28)
    b2e, b2o, b2c = _band_conv_weights(params['conv2_w'], params['conv2_b'], 12)
    h0 = params['fc1_w'].shape[1]
    # torch flatten order is (oc, ph, pw); regroup fc1 rows by ph so the kernel
    # can consume the pooled conv2 layout (cols = oc*4 + pw) with 4 small matmuls.
    w1p = (params['fc1_w'].reshape(16, 4, 4, h0)
           .transpose(1, 0, 2, 3).reshape(4, 64, h0))
    fc1b = params['fc1_b'].reshape(1, -1)
    fc2w, fc2b = params['fc2_w'], params['fc2_b'].reshape(1, -1)
    clsw, clsb = params['cls_w'], params['cls_b'].reshape(1, -1)

    # ---- activations: (N,1,28,28) -> h-major 2-D slab (28N, 28), row = h*N + b ----
    x2 = jnp.transpose(x.reshape(n, 28, 28), (1, 0, 2)).reshape(28 * n, 28)

    out_dim = clsw.shape[1]
    operands = (x2, b1e, b1o, b1c, b2e, b2o, b2c, w1p,
                fc1b, fc2w, fc2b, clsw, clsb)
    kernel = functools.partial(_fused_cnn_kernel, n_batch=n)
    return pl.pallas_call(
        kernel,
        grid=(1,),
        in_specs=[_full_spec(op.shape) for op in operands],
        out_specs=_full_spec((n, out_dim)),
        out_shape=jax.ShapeDtypeStruct((n, out_dim), x.dtype),
        scratch_shapes=[
            pltpu.VMEM((12 * n, 72), jnp.float32),   # pooled conv1 activations
        ],
    )(*operands)


# ------------------------------- params & reference --------------------------

def init_params(key, hidden_dims=(32, 16), output_dim=10):
    input_dim = 16 * 4 * 4
    ks = jax.random.split(key, 10)

    def u(k, fan_in, shape):
        bound = 1.0 / jnp.sqrt(jnp.float32(fan_in))
        return jax.random.uniform(k, shape, jnp.float32, -bound, bound)

    return dict(
        conv1_w=u(ks[0], 1 * 5 * 5, (6, 1, 5, 5)),
        conv1_b=u(ks[1], 1 * 5 * 5, (6,)),
        conv2_w=u(ks[2], 6 * 5 * 5, (16, 6, 5, 5)),
        conv2_b=u(ks[3], 6 * 5 * 5, (16,)),
        fc1_w=u(ks[4], input_dim, (input_dim, hidden_dims[0])),
        fc1_b=u(ks[5], input_dim, (hidden_dims[0],)),
        fc2_w=u(ks[6], hidden_dims[0], (hidden_dims[0], hidden_dims[1])),
        fc2_b=u(ks[7], hidden_dims[0], (hidden_dims[1],)),
        cls_w=u(ks[8], hidden_dims[1], (hidden_dims[1], output_dim)),
        cls_b=u(ks[9], hidden_dims[1], (output_dim,)),
    )


def reference(params, x):
    """Pure-JAX reference (matches the PyTorch module semantics)."""
    hp = jax.lax.Precision.HIGHEST

    def conv(x, w, b):
        y = jax.lax.conv_general_dilated(
            x, w, (1, 1), 'VALID',
            dimension_numbers=('NCHW', 'OIHW', 'NCHW'), precision=hp)
        return jax.nn.relu(y + b.reshape(1, -1, 1, 1))

    def pool(x):
        return jax.lax.reduce_window(x, -jnp.inf, jax.lax.max,
                                     (1, 1, 2, 2), (1, 1, 2, 2), 'VALID')

    x = pool(conv(x, params['conv1_w'], params['conv1_b']))
    x = pool(conv(x, params['conv2_w'], params['conv2_b']))
    x = x.reshape(x.shape[0], -1)
    x = jax.nn.relu(jnp.dot(x, params['fc1_w'], precision=hp) + params['fc1_b'])
    x = jax.nn.relu(jnp.dot(x, params['fc2_w'], precision=hp) + params['fc2_b'])
    return jnp.dot(x, params['cls_w'], precision=hp) + params['cls_b']


if __name__ == "__main__":
    key = jax.random.PRNGKey(0)
    kx, kp = jax.random.split(key)
    x = jax.random.normal(kx, (2, 1, 28, 28), jnp.float32)
    params = init_params(kp)

    out = jax.jit(forward)(params, x)
    jax.block_until_ready(out)
    assert out.shape == (2, 10), out.shape

    ref = reference(params, x)
    err = float(jnp.max(jnp.abs(out - ref)))
    assert err < 1e-2, err

    print("KERNEL_OK")
</pallas_src>

<mosaic_0001>
module attributes {stable_mosaic.version = 11 : i64} {
  func.func @_fused_cnn_kernel(%arg0: i32, %arg1: memref<56x28xf32, #tpu.memory_space<vmem>>, %arg2: memref<5x28x72xf32, #tpu.memory_space<vmem>>, %arg3: memref<5x28x72xf32, #tpu.memory_space<vmem>>, %arg4: memref<1x72xf32, #tpu.memory_space<vmem>>, %arg5: memref<5x72x64xf32, #tpu.memory_space<vmem>>, %arg6: memref<5x72x64xf32, #tpu.memory_space<vmem>>, %arg7: memref<1x64xf32, #tpu.memory_space<vmem>>, %arg8: memref<4x64x32xf32, #tpu.memory_space<vmem>>, %arg9: memref<1x32xf32, #tpu.memory_space<vmem>>, %arg10: memref<32x16xf32, #tpu.memory_space<vmem>>, %arg11: memref<1x16xf32, #tpu.memory_space<vmem>>, %arg12: memref<16x10xf32, #tpu.memory_space<vmem>>, %arg13: memref<1x10xf32, #tpu.memory_space<vmem>>, %arg14: memref<2x10xf32, #tpu.memory_space<vmem>>, %arg15: memref<24x72xf32, #tpu.memory_space<vmem>>) attributes {dimension_semantics = [#tpu.dimension_semantics<arbitrary>], iteration_bounds = array<i64: 1>, scalar_prefetch = 0 : i64, scratch_operands = 1 : i64, tpu.core_type = #tpu.core_type<tc>, window_params = [{pipeline_mode = #tpu.pipeline_mode<synchronous>, transform_indices = @transform_0, window_bounds = array<i64: 56, 28>}, {pipeline_mode = #tpu.pipeline_mode<synchronous>, transform_indices = @transform_1, window_bounds = array<i64: 5, 28, 72>}, {pipeline_mode = #tpu.pipeline_mode<synchronous>, transform_indices = @transform_2, window_bounds = array<i64: 5, 28, 72>}, {pipeline_mode = #tpu.pipeline_mode<synchronous>, transform_indices = @transform_3, window_bounds = array<i64: 1, 72>}, {pipeline_mode = #tpu.pipeline_mode<synchronous>, transform_indices = @transform_4, window_bounds = array<i64: 5, 72, 64>}, {pipeline_mode = #tpu.pipeline_mode<synchronous>, transform_indices = @transform_5, window_bounds = array<i64: 5, 72, 64>}, {pipeline_mode = #tpu.pipeline_mode<synchronous>, transform_indices = @transform_6, window_bounds = array<i64: 1, 64>}, {pipeline_mode = #tpu.pipeline_mode<synchronous>, transform_indices = @transform_7, window_bounds = array<i64: 4, 64, 32>}, {pipeline_mode = #tpu.pipeline_mode<synchronous>, transform_indices = @transform_8, window_bounds = array<i64: 1, 32>}, {pipeline_mode = #tpu.pipeline_mode<synchronous>, transform_indices = @transform_9, window_bounds = array<i64: 32, 16>}, {pipeline_mode = #tpu.pipeline_mode<synchronous>, transform_indices = @transform_10, window_bounds = array<i64: 1, 16>}, {pipeline_mode = #tpu.pipeline_mode<synchronous>, transform_indices = @transform_11, window_bounds = array<i64: 16, 10>}, {pipeline_mode = #tpu.pipeline_mode<synchronous>, transform_indices = @transform_12, window_bounds = array<i64: 1, 10>}, {pipeline_mode = #tpu.pipeline_mode<synchronous>, transform_indices = @transform_13, window_bounds = array<i64: 2, 10>}]} {
    %c0 = arith.constant 0 : index
    %c0_0 = arith.constant 0 : index
    %0 = vector.load %arg1[%c0, %c0_0] : memref<56x28xf32, #tpu.memory_space<vmem>>, vector<48x28xf32>
    %c0_1 = arith.constant 0 : index
    %c0_2 = arith.constant 0 : index
    %c0_3 = arith.constant 0 : index
    %1 = vector.load %arg2[%c0_1, %c0_2, %c0_3] : memref<5x28x72xf32, #tpu.memory_space<vmem>>, vector<1x28x72xf32>
    %2 = vector.shape_cast %1 : vector<1x28x72xf32> to vector<28x72xf32>
    %cst = arith.constant dense<0.000000e+00> : vector<48x72xf32>
    %3 = tpu.matmul %0, %2, %cst {dimension_numbers = #tpu.dot_dimension_numbers<[1], [0], [0], [1], [0, 0, 1, 1], [], []>} : vector<48x28xf32>, vector<28x72xf32>, vector<48x72xf32> -> vector<48x72xf32>
    %c0_4 = arith.constant 0 : index
    %c0_5 = arith.constant 0 : index
    %c0_6 = arith.constant 0 : index
    %4 = vector.load %arg3[%c0_4, %c0_5, %c0_6] : memref<5x28x72xf32, #tpu.memory_space<vmem>>, vector<1x28x72xf32>
    %5 = vector.shape_cast %4 : vector<1x28x72xf32> to vector<28x72xf32>
    %cst_7 = arith.constant dense<0.000000e+00> : vector<48x72xf32>
    %6 = tpu.matmul %0, %5, %cst_7 {dimension_numbers = #tpu.dot_dimension_numbers<[1], [0], [0], [1], [0, 0, 1, 1], [], []>} : vector<48x28xf32>, vector<28x72xf32>, vector<48x72xf32> -> vector<48x72xf32>
    %c2 = arith.constant 2 : index
    %c0_8 = arith.constant 0 : index
    %7 = vector.load %arg1[%c2, %c0_8] : memref<56x28xf32, #tpu.memory_space<vmem>>, vector<48x28xf32>
    %c1 = arith.constant 1 : index
    %c0_9 = arith.constant 0 : index
    %c0_10 = arith.constant 0 : index
    %8 = vector.load %arg2[%c1, %c0_9, %c0_10] : memref<5x28x72xf32, #tpu.memory_space<vmem>>, vector<1x28x72xf32>
    %9 = vector.shape_cast %8 : vector<1x28x72xf32> to vector<28x72xf32>
    %cst_11 = arith.constant dense<0.000000e+00> : vector<48x72xf32>
    %10 = tpu.matmul %7, %9, %cst_11 {dimension_numbers = #tpu.dot_dimension_numbers<[1], [0], [0], [1], [0, 0, 1, 1], [], []>} : vector<48x28xf32>, vector<28x72xf32>, vector<48x72xf32> -> vector<48x72xf32>
    %c1_12 = arith.constant 1 : index
    %c0_13 = arith.constant 0 : index
    %c0_14 = arith.constant 0 : index
    %11 = vector.load %arg3[%c1_12, %c0_13, %c0_14] : memref<5x28x72xf32, #tpu.memory_space<vmem>>, vector<1x28x72xf32>
    %12 = vector.shape_cast %11 : vector<1x28x72xf32> to vector<28x72xf32>
    %cst_15 = arith.constant dense<0.000000e+00> : vector<48x72xf32>
    %13 = tpu.matmul %7, %12, %cst_15 {dimension_numbers = #tpu.dot_dimension_numbers<[1], [0], [0], [1], [0, 0, 1, 1], [], []>} : vector<48x28xf32>, vector<28x72xf32>, vector<48x72xf32> -> vector<48x72xf32>
    %14 = arith.addf %3, %10 : vector<48x72xf32>
    %15 = arith.addf %6, %13 : vector<48x72xf32>
    %c4 = arith.constant 4 : index
    %c0_16 = arith.constant 0 : index
    %16 = vector.load %arg1[%c4, %c0_16] : memref<56x28xf32, #tpu.memory_space<vmem>>, vector<48x28xf32>
    %c2_17 = arith.constant 2 : index
    %c0_18 = arith.constant 0 : index
    %c0_19 = arith.constant 0 : index
    %17 = vector.load %arg2[%c2_17, %c0_18, %c0_19] : memref<5x28x72xf32, #tpu.memory_space<vmem>>, vector<1x28x72xf32>
    %18 = vector.shape_cast %17 : vector<1x28x72xf32> to vector<28x72xf32>
    %cst_20 = arith.constant dense<0.000000e+00> : vector<48x72xf32>
    %19 = tpu.matmul %16, %18, %cst_20 {dimension_numbers = #tpu.dot_dimension_numbers<[1], [0], [0], [1], [0, 0, 1, 1], [], []>} : vector<48x28xf32>, vector<28x72xf32>, vector<48x72xf32> -> vector<48x72xf32>
    %c2_21 = arith.constant 2 : index
    %c0_22 = arith.constant 0 : index
    %c0_23 = arith.constant 0 : index
    %20 = vector.load %arg3[%c2_21, %c0_22, %c0_23] : memref<5x28x72xf32, #tpu.memory_space<vmem>>, vector<1x28x72xf32>
    %21 = vector.shape_cast %20 : vector<1x28x72xf32> to vector<28x72xf32>
    %cst_24 = arith.constant dense<0.000000e+00> : vector<48x72xf32>
    %22 = tpu.matmul %16, %21, %cst_24 {dimension_numbers = #tpu.dot_dimension_numbers<[1], [0], [0], [1], [0, 0, 1, 1], [], []>} : vector<48x28xf32>, vector<28x72xf32>, vector<48x72xf32> -> vector<48x72xf32>
    %23 = arith.addf %14, %19 : vector<48x72xf32>
    %24 = arith.addf %15, %22 : vector<48x72xf32>
    %c6 = arith.constant 6 : index
    %c0_25 = arith.constant 0 : index
    %25 = vector.load %arg1[%c6, %c0_25] : memref<56x28xf32, #tpu.memory_space<vmem>>, vector<48x28xf32>
    %c3 = arith.constant 3 : index
    %c0_26 = arith.constant 0 : index
    %c0_27 = arith.constant 0 : index
    %26 = vector.load %arg2[%c3, %c0_26, %c0_27] : memref<5x28x72xf32, #tpu.memory_space<vmem>>, vector<1x28x72xf32>
    %27 = vector.shape_cast %26 : vector<1x28x72xf32> to vector<28x72xf32>
    %cst_28 = arith.constant dense<0.000000e+00> : vector<48x72xf32>
    %28 = tpu.matmul %25, %27, %cst_28 {dimension_numbers = #tpu.dot_dimension_numbers<[1], [0], [0], [1], [0, 0, 1, 1], [], []>} : vector<48x28xf32>, vector<28x72xf32>, vector<48x72xf32> -> vector<48x72xf32>
    %c3_29 = arith.constant 3 : index
    %c0_30 = arith.constant 0 : index
    %c0_31 = arith.constant 0 : index
    %29 = vector.load %arg3[%c3_29, %c0_30, %c0_31] : memref<5x28x72xf32, #tpu.memory_space<vmem>>, vector<1x28x72xf32>
    %30 = vector.shape_cast %29 : vector<1x28x72xf32> to vector<28x72xf32>
    %cst_32 = arith.constant dense<0.000000e+00> : vector<48x72xf32>
    %31 = tpu.matmul %25, %30, %cst_32 {dimension_numbers = #tpu.dot_dimension_numbers<[1], [0], [0], [1], [0, 0, 1, 1], [], []>} : vector<48x28xf32>, vector<28x72xf32>, vector<48x72xf32> -> vector<48x72xf32>
    %32 = arith.addf %23, %28 : vector<48x72xf32>
    %33 = arith.addf %24, %31 : vector<48x72xf32>
    %c8 = arith.constant 8 : index
    %c0_33 = arith.constant 0 : index
    %34 = vector.load %arg1[%c8, %c0_33] : memref<56x28xf32, #tpu.memory_space<vmem>>, vector<48x28xf32>
    %c4_34 = arith.constant 4 : index
    %c0_35 = arith.constant 0 : index
    %c0_36 = arith.constant 0 : index
    %35 = vector.load %arg2[%c4_34, %c0_35, %c0_36] : memref<5x28x72xf32, #tpu.memory_space<vmem>>, vector<1x28x72xf32>
    %36 = vector.shape_cast %35 : vector<1x28x72xf32> to vector<28x72xf32>
    %cst_37 = arith.constant dense<0.000000e+00> : vector<48x72xf32>
    %37 = tpu.matmul %34, %36, %cst_37 {dimension_numbers = #tpu.dot_dimension_numbers<[1], [0], [0], [1], [0, 0, 1, 1], [], []>} : vector<48x28xf32>, vector<28x72xf32>, vector<48x72xf32> -> vector<48x72xf32>
    %c4_38 = arith.constant 4 : index
    %c0_39 = arith.constant 0 : index
    %c0_40 = arith.constant 0 : index
    %38 = vector.load %arg3[%c4_38, %c0_39, %c0_40] : memref<5x28x72xf32, #tpu.memory_space<vmem>>, vector<1x28x72xf32>
    %39 = vector.shape_cast %38 : vector<1x28x72xf32> to vector<28x72xf32>
    %cst_41 = arith.constant dense<0.000000e+00> : vector<48x72xf32>
    %40 = tpu.matmul %34, %39, %cst_41 {dimension_numbers = #tpu.dot_dimension_numbers<[1], [0], [0], [1], [0, 0, 1, 1], [], []>} : vector<48x28xf32>, vector<28x72xf32>, vector<48x72xf32> -> vector<48x72xf32>
    %41 = arith.addf %32, %37 : vector<48x72xf32>
    %42 = arith.addf %33, %40 : vector<48x72xf32>
    %43 = arith.maximumf %41, %42 : vector<48x72xf32>
    %c0_42 = arith.constant 0 : index
    %c0_43 = arith.constant 0 : index
    %44 = vector.load %arg4[%c0_42, %c0_43] : memref<1x72xf32, #tpu.memory_space<vmem>>, vector<1x72xf32>
    %45 = vector.broadcast %44 : vector<1x72xf32> to vector<48x72xf32>
    %46 = arith.addf %43, %45 : vector<48x72xf32>
    %cst_44 = arith.constant 0.000000e+00 : f32
    %47 = vector.broadcast %cst_44 : f32 to vector<48x72xf32>
    %48 = arith.maximumf %46, %47 : vector<48x72xf32>
    %49 = vector.extract_strided_slice %48 {offsets = [0, 0], sizes = [2, 72], strides = [1, 1]} : vector<48x72xf32> to vector<2x72xf32>
    %50 = vector.extract_strided_slice %48 {offsets = [2, 0], sizes = [2, 72], strides = [1, 1]} : vector<48x72xf32> to vector<2x72xf32>
    %51 = arith.maximumf %49, %50 : vector<2x72xf32>
    %c0_45 = arith.constant 0 : index
    %c0_46 = arith.constant 0 : index
    %52 = vector.load %arg15[%c0_45, %c0_46] : memref<24x72xf32, #tpu.memory_space<vmem>>, vector<2x72xf32>
    tpu.vector_store %arg15[%c0_45, %c0_46], %51 {strides = array<i32>} : memref<24x72xf32, #tpu.memory_space<vmem>>, vector<2x72xf32>,
    %53 = vector.extract_strided_slice %48 {offsets = [4, 0], sizes = [2, 72], strides = [1, 1]} : vector<48x72xf32> to vector<2x72xf32>
    %54 = vector.extract_strided_slice %48 {offsets = [6, 0], sizes = [2, 72], strides = [1, 1]} : vector<48x72xf32> to vector<2x72xf32>
    %55 = arith.maximumf %53, %54 : vector<2x72xf32>
    %c2_47 = arith.constant 2 : index
    %c0_48 = arith.constant 0 : index
    %56 = vector.load %arg15[%c2_47, %c0_48] : memref<24x72xf32, #tpu.memory_space<vmem>>, vector<2x72xf32>
    tpu.vector_store %arg15[%c2_47, %c0_48], %55 {strides = array<i32>} : memref<24x72xf32, #tpu.memory_space<vmem>>, vector<2x72xf32>,
    %57 = vector.extract_strided_slice %48 {offsets = [8, 0], sizes = [2, 72], strides = [1, 1]} : vector<48x72xf32> to vector<2x72xf32>
    %58 = vector.extract_strided_slice %48 {offsets = [10, 0], sizes = [2, 72], strides = [1, 1]} : vector<48x72xf32> to vector<2x72xf32>
    %59 = arith.maximumf %57, %58 : vector<2x72xf32>
    %c4_49 = arith.constant 4 : index
    %c0_50 = arith.constant 0 : index
    %60 = vector.load %arg15[%c4_49, %c0_50] : memref<24x72xf32, #tpu.memory_space<vmem>>, vector<2x72xf32>
    tpu.vector_store %arg15[%c4_49, %c0_50], %59 {strides = array<i32>} : memref<24x72xf32, #tpu.memory_space<vmem>>, vector<2x72xf32>,
    %61 = vector.extract_strided_slice %48 {offsets = [12, 0], sizes = [2, 72], strides = [1, 1]} : vector<48x72xf32> to vector<2x72xf32>
    %62 = vector.extract_strided_slice %48 {offsets = [14, 0], sizes = [2, 72], strides = [1, 1]} : vector<48x72xf32> to vector<2x72xf32>
    %63 = arith.maximumf %61, %62 : vector<2x72xf32>
    %c6_51 = arith.constant 6 : index
    %c0_52 = arith.constant 0 : index
    %64 = vector.load %arg15[%c6_51, %c0_52] : memref<24x72xf32, #tpu.memory_space<vmem>>, vector<2x72xf32>
    tpu.vector_store %arg15[%c6_51, %c0_52], %63 {strides = array<i32>} : memref<24x72xf32, #tpu.memory_space<vmem>>, vector<2x72xf32>,
    %65 = vector.extract_strided_slice %48 {offsets = [16, 0], sizes = [2, 72], strides = [1, 1]} : vector<48x72xf32> to vector<2x72xf32>
    %66 = vector.extract_strided_slice %48 {offsets = [18, 0], sizes = [2, 72], strides = [1, 1]} : vector<48x72xf32> to vector<2x72xf32>
    %67 = arith.maximumf %65, %66 : vector<2x72xf32>
    %c8_53 = arith.constant 8 : index
    %c0_54 = arith.constant 0 : index
    %68 = vector.load %arg15[%c8_53, %c0_54] : memref<24x72xf32, #tpu.memory_space<vmem>>, vector<2x72xf32>
    tpu.vector_store %arg15[%c8_53, %c0_54], %67 {strides = array<i32>} : memref<24x72xf32, #tpu.memory_space<vmem>>, vector<2x72xf32>,
    %69 = vector.extract_strided_slice %48 {offsets = [20, 0], sizes = [2, 72], strides = [1, 1]} : vector<48x72xf32> to vector<2x72xf32>
    %70 = vector.extract_strided_slice %48 {offsets = [22, 0], sizes = [2, 72], strides = [1, 1]} : vector<48x72xf32> to vector<2x72xf32>
    %71 = arith.maximumf %69, %70 : vector<2x72xf32>
    %c10 = arith.constant 10 : index
    %c0_55 = arith.constant 0 : index
    %72 = vector.load %arg15[%c10, %c0_55] : memref<24x72xf32, #tpu.memory_space<vmem>>, vector<2x72xf32>
    tpu.vector_store %arg15[%c10, %c0_55], %71 {strides = array<i32>} : memref<24x72xf32, #tpu.memory_space<vmem>>, vector<2x72xf32>,
    %73 = vector.extract_strided_slice %48 {offsets = [24, 0], sizes = [2, 72], strides = [1, 1]} : vector<48x72xf32> to vector<2x72xf32>
    %74 = vector.extract_strided_slice %48 {offsets = [26, 0], sizes = [2, 72], strides = [1, 1]} : vector<48x72xf32> to vector<2x72xf32>
    %75 = arith.maximumf %73, %74 : vector<2x72xf32>
    %c12 = arith.constant 12 : index
    %c0_56 = arith.constant 0 : index
    %76 = vector.load %arg15[%c12, %c0_56] : memref<24x72xf32, #tpu.memory_space<vmem>>, vector<2x72xf32>
    tpu.vector_store %arg15[%c12, %c0_56], %75 {strides = array<i32>} : memref<24x72xf32, #tpu.memory_space<vmem>>, vector<2x72xf32>,
    %77 = vector.extract_strided_slice %48 {offsets = [28, 0], sizes = [2, 72], strides = [1, 1]} : vector<48x72xf32> to vector<2x72xf32>
    %78 = vector.extract_strided_slice %48 {offsets = [30, 0], sizes = [2, 72], strides = [1, 1]} : vector<48x72xf32> to vector<2x72xf32>
    %79 = arith.maximumf %77, %78 : vector<2x72xf32>
    %c14 = arith.constant 14 : index
    %c0_57 = arith.constant 0 : index
    %80 = vector.load %arg15[%c14, %c0_57] : memref<24x72xf32, #tpu.memory_space<vmem>>, vector<2x72xf32>
    tpu.vector_store %arg15[%c14, %c0_57], %79 {strides = array<i32>} : memref<24x72xf32, #tpu.memory_space<vmem>>, vector<2x72xf32>,
    %81 = vector.extract_strided_slice %48 {offsets = [32, 0], sizes = [2, 72], strides = [1, 1]} : vector<48x72xf32> to vector<2x72xf32>
    %82 = vector.extract_strided_slice %48 {offsets = [34, 0], sizes = [2, 72], strides = [1, 1]} : vector<48x72xf32> to vector<2x72xf32>
    %83 = arith.maximumf %81, %82 : vector<2x72xf32>
    %c16 = arith.constant 16 : index
    %c0_58 = arith.constant 0 : index
    %84 = vector.load %arg15[%c16, %c0_58] : memref<24x72xf32, #tpu.memory_space<vmem>>, vector<2x72xf32>
    tpu.vector_store %arg15[%c16, %c0_58], %83 {strides = array<i32>} : memref<24x72xf32, #tpu.memory_space<vmem>>, vector<2x72xf32>,
    %85 = vector.extract_strided_slice %48 {offsets = [36, 0], sizes = [2, 72], strides = [1, 1]} : vector<48x72xf32> to vector<2x72xf32>
    %86 = vector.extract_strided_slice %48 {offsets = [38, 0], sizes = [2, 72], strides = [1, 1]} : vector<48x72xf32> to vector<2x72xf32>
    %87 = arith.maximumf %85, %86 : vector<2x72xf32>
    %c18 = arith.constant 18 : index
    %c0_59 = arith.constant 0 : index
    %88 = vector.load %arg15[%c18, %c0_59] : memref<24x72xf32, #tpu.memory_space<vmem>>, vector<2x72xf32>
    tpu.vector_store %arg15[%c18, %c0_59], %87 {strides = array<i32>} : memref<24x72xf32, #tpu.memory_space<vmem>>, vector<2x72xf32>,
    %89 = vector.extract_strided_slice %48 {offsets = [40, 0], sizes = [2, 72], strides = [1, 1]} : vector<48x72xf32> to vector<2x72xf32>
    %90 = vector.extract_strided_slice %48 {offsets = [42, 0], sizes = [2, 72], strides = [1, 1]} : vector<48x72xf32> to vector<2x72xf32>
    %91 = arith.maximumf %89, %90 : vector<2x72xf32>
    %c20 = arith.constant 20 : index
    %c0_60 = arith.constant 0 : index
    %92 = vector.load %arg15[%c20, %c0_60] : memref<24x72xf32, #tpu.memory_space<vmem>>, vector<2x72xf32>
    tpu.vector_store %arg15[%c20, %c0_60], %91 {strides = array<i32>} : memref<24x72xf32, #tpu.memory_space<vmem>>, vector<2x72xf32>,
    %93 = vector.extract_strided_slice %48 {offsets = [44, 0], sizes = [2, 72], strides = [1, 1]} : vector<48x72xf32> to vector<2x72xf32>
    %94 = vector.extract_strided_slice %48 {offsets = [46, 0], sizes = [2, 72], strides = [1, 1]} : vector<48x72xf32> to vector<2x72xf32>
    %95 = arith.maximumf %93, %94 : vector<2x72xf32>
    %c22 = arith.constant 22 : index
    %c0_61 = arith.constant 0 : index
    %96 = vector.load %arg15[%c22, %c0_61] : memref<24x72xf32, #tpu.memory_space<vmem>>, vector<2x72xf32>
    tpu.vector_store %arg15[%c22, %c0_61], %95 {strides = array<i32>} : memref<24x72xf32, #tpu.memory_space<vmem>>, vector<2x72xf32>,
    %c0_62 = arith.constant 0 : index
    %c0_63 = arith.constant 0 : index
    %97 = vector.load %arg15[%c0_62, %c0_63] : memref<24x72xf32, #tpu.memory_space<vmem>>, vector<16x72xf32>
    %c0_64 = arith.constant 0 : index
    %c0_65 = arith.constant 0 : index
    %c0_66 = arith.constant 0 : index
    %98 = vector.load %arg5[%c0_64, %c0_65, %c0_66] : memref<5x72x64xf32, #tpu.memory_space<vmem>>, vector<1x72x64xf32>
    %99 = vector.shape_cast %98 : vector<1x72x64xf32> to vector<72x64xf32>
    %cst_67 = arith.constant dense<0.000000e+00> : vector<16x64xf32>
    %100 = tpu.matmul %97, %99, %cst_67 {dimension_numbers = #tpu.dot_dimension_numbers<[1], [0], [0], [1], [0, 0, 1, 1], [], []>} : vector<16x72xf32>, vector<72x64xf32>, vector<16x64xf32> -> vector<16x64xf32>
    %c0_68 = arith.constant 0 : index
    %c0_69 = arith.constant 0 : index
    %c0_70 = arith.constant 0 : index
    %101 = vector.load %arg6[%c0_68, %c0_69, %c0_70] : memref<5x72x64xf32, #tpu.memory_space<vmem>>, vector<1x72x64xf32>
    %102 = vector.shape_cast %101 : vector<1x72x64xf32> to vector<72x64xf32>
    %cst_71 = arith.constant dense<0.000000e+00> : vector<16x64xf32>
    %103 = tpu.matmul %97, %102, %cst_71 {dimension_numbers = #tpu.dot_dimension_numbers<[1], [0], [0], [1], [0, 0, 1, 1], [], []>} : vector<16x72xf32>, vector<72x64xf32>, vector<16x64xf32> -> vector<16x64xf32>
    %c2_72 = arith.constant 2 : index
    %c0_73 = arith.constant 0 : index
    %104 = vector.load %arg15[%c2_72, %c0_73] : memref<24x72xf32, #tpu.memory_space<vmem>>, vector<16x72xf32>
    %c1_74 = arith.constant 1 : index
    %c0_75 = arith.constant 0 : index
    %c0_76 = arith.constant 0 : index
    %105 = vector.load %arg5[%c1_74, %c0_75, %c0_76] : memref<5x72x64xf32, #tpu.memory_space<vmem>>, vector<1x72x64xf32>
    %106 = vector.shape_cast %105 : vector<1x72x64xf32> to vector<72x64xf32>
    %cst_77 = arith.constant dense<0.000000e+00> : vector<16x64xf32>
    %107 = tpu.matmul %104, %106, %cst_77 {dimension_numbers = #tpu.dot_dimension_numbers<[1], [0], [0], [1], [0, 0, 1, 1], [], []>} : vector<16x72xf32>, vector<72x64xf32>, vector<16x64xf32> -> vector<16x64xf32>
    %c1_78 = arith.constant 1 : index
    %c0_79 = arith.constant 0 : index
    %c0_80 = arith.constant 0 : index
    %108 = vector.load %arg6[%c1_78, %c0_79, %c0_80] : memref<5x72x64xf32, #tpu.memory_space<vmem>>, vector<1x72x64xf32>
    %109 = vector.shape_cast %108 : vector<1x72x64xf32> to vector<72x64xf32>
    %cst_81 = arith.constant dense<0.000000e+00> : vector<16x64xf32>
    %110 = tpu.matmul %104, %109, %cst_81 {dimension_numbers = #tpu.dot_dimension_numbers<[1], [0], [0], [1], [0, 0, 1, 1], [], []>} : vector<16x72xf32>, vector<72x64xf32>, vector<16x64xf32> -> vector<16x64xf32>
    %111 = arith.addf %100, %107 : vector<16x64xf32>
    %112 = arith.addf %103, %110 : vector<16x64xf32>
    %c4_82 = arith.constant 4 : index
    %c0_83 = arith.constant 0 : index
    %113 = vector.load %arg15[%c4_82, %c0_83] : memref<24x72xf32, #tpu.memory_space<vmem>>, vector<16x72xf32>
    %c2_84 = arith.constant 2 : index
    %c0_85 = arith.constant 0 : index
    %c0_86 = arith.constant 0 : index
    %114 = vector.load %arg5[%c2_84, %c0_85, %c0_86] : memref<5x72x64xf32, #tpu.memory_space<vmem>>, vector<1x72x64xf32>
    %115 = vector.shape_cast %114 : vector<1x72x64xf32> to vector<72x64xf32>
    %cst_87 = arith.constant dense<0.000000e+00> : vector<16x64xf32>
    %116 = tpu.matmul %113, %115, %cst_87 {dimension_numbers = #tpu.dot_dimension_numbers<[1], [0], [0], [1], [0, 0, 1, 1], [], []>} : vector<16x72xf32>, vector<72x64xf32>, vector<16x64xf32> -> vector<16x64xf32>
    %c2_88 = arith.constant 2 : index
    %c0_89 = arith.constant 0 : index
    %c0_90 = arith.constant 0 : index
    %117 = vector.load %arg6[%c2_88, %c0_89, %c0_90] : memref<5x72x64xf32, #tpu.memory_space<vmem>>, vector<1x72x64xf32>
    %118 = vector.shape_cast %117 : vector<1x72x64xf32> to vector<72x64xf32>
    %cst_91 = arith.constant dense<0.000000e+00> : vector<16x64xf32>
    %119 = tpu.matmul %113, %118, %cst_91 {dimension_numbers = #tpu.dot_dimension_numbers<[1], [0], [0], [1], [0, 0, 1, 1], [], []>} : vector<16x72xf32>, vector<72x64xf32>, vector<16x64xf32> -> vector<16x64xf32>
    %120 = arith.addf %111, %116 : vector<16x64xf32>
    %121 = arith.addf %112, %119 : vector<16x64xf32>
    %c6_92 = arith.constant 6 : index
    %c0_93 = arith.constant 0 : index
    %122 = vector.load %arg15[%c6_92, %c0_93] : memref<24x72xf32, #tpu.memory_space<vmem>>, vector<16x72xf32>
    %c3_94 = arith.constant 3 : index
    %c0_95 = arith.constant 0 : index
    %c0_96 = arith.constant 0 : index
    %123 = vector.load %arg5[%c3_94, %c0_95, %c0_96] : memref<5x72x64xf32, #tpu.memory_space<vmem>>, vector<1x72x64xf32>
    %124 = vector.shape_cast %123 : vector<1x72x64xf32> to vector<72x64xf32>
    %cst_97 = arith.constant dense<0.000000e+00> : vector<16x64xf32>
    %125 = tpu.matmul %122, %124, %cst_97 {dimension_numbers = #tpu.dot_dimension_numbers<[1], [0], [0], [1], [0, 0, 1, 1], [], []>} : vector<16x72xf32>, vector<72x64xf32>, vector<16x64xf32> -> vector<16x64xf32>
    %c3_98 = arith.constant 3 : index
    %c0_99 = arith.constant 0 : index
    %c0_100 = arith.constant 0 : index
    %126 = vector.load %arg6[%c3_98, %c0_99, %c0_100] : memref<5x72x64xf32, #tpu.memory_space<vmem>>, vector<1x72x64xf32>
    %127 = vector.shape_cast %126 : vector<1x72x64xf32> to vector<72x64xf32>
    %cst_101 = arith.constant dense<0.000000e+00> : vector<16x64xf32>
    %128 = tpu.matmul %122, %127, %cst_101 {dimension_numbers = #tpu.dot_dimension_numbers<[1], [0], [0], [1], [0, 0, 1, 1], [], []>} : vector<16x72xf32>, vector<72x64xf32>, vector<16x64xf32> -> vector<16x64xf32>
    %129 = arith.addf %120, %125 : vector<16x64xf32>
    %130 = arith.addf %121, %128 : vector<16x64xf32>
    %c8_102 = arith.constant 8 : index
    %c0_103 = arith.constant 0 : index
    %131 = vector.load %arg15[%c8_102, %c0_103] : memref<24x72xf32, #tpu.memory_space<vmem>>, vector<16x72xf32>
    %c4_104 = arith.constant 4 : index
    %c0_105 = arith.constant 0 : index
    %c0_106 = arith.constant 0 : index
    %132 = vector.load %arg5[%c4_104, %c0_105, %c0_106] : memref<5x72x64xf32, #tpu.memory_space<vmem>>, vector<1x72x64xf32>
    %133 = vector.shape_cast %132 : vector<1x72x64xf32> to vector<72x64xf32>
    %cst_107 = arith.constant dense<0.000000e+00> : vector<16x64xf32>
    %134 = tpu.matmul %131, %133, %cst_107 {dimension_numbers = #tpu.dot_dimension_numbers<[1], [0], [0], [1], [0, 0, 1, 1], [], []>} : vector<16x72xf32>, vector<72x64xf32>, vector<16x64xf32> -> vector<16x64xf32>
    %c4_108 = arith.constant 4 : index
    %c0_109 = arith.constant 0 : index
    %c0_110 = arith.constant 0 : index
    %135 = vector.load %arg6[%c4_108, %c0_109, %c0_110] : memref<5x72x64xf32, #tpu.memory_space<vmem>>, vector<1x72x64xf32>
    %136 = vector.shape_cast %135 : vector<1x72x64xf32> to vector<72x64xf32>
    %cst_111 = arith.constant dense<0.000000e+00> : vector<16x64xf32>
    %137 = tpu.matmul %131, %136, %cst_111 {dimension_numbers = #tpu.dot_dimension_numbers<[1], [0], [0], [1], [0, 0, 1, 1], [], []>} : vector<16x72xf32>, vector<72x64xf32>, vector<16x64xf32> -> vector<16x64xf32>
    %138 = arith.addf %129, %134 : vector<16x64xf32>
    %139 = arith.addf %130, %137 : vector<16x64xf32>
    %140 = arith.maximumf %138, %139 : vector<16x64xf32>
    %c0_112 = arith.constant 0 : index
    %c0_113 = arith.constant 0 : index
    %141 = vector.load %arg7[%c0_112, %c0_113] : memref<1x64xf32, #tpu.memory_space<vmem>>, vector<1x64xf32>
    %142 = vector.broadcast %141 : vector<1x64xf32> to vector<16x64xf32>
    %143 = arith.addf %140, %142 : vector<16x64xf32>
    %cst_114 = arith.constant 0.000000e+00 : f32
    %144 = vector.broadcast %cst_114 : f32 to vector<16x64xf32>
    %145 = arith.maximumf %143, %144 : vector<16x64xf32>
    %146 = vector.extract_strided_slice %145 {offsets = [0, 0], sizes = [2, 64], strides = [1, 1]} : vector<16x64xf32> to vector<2x64xf32>
    %147 = vector.extract_strided_slice %145 {offsets = [2, 0], sizes = [2, 64], strides = [1, 1]} : vector<16x64xf32> to vector<2x64xf32>
    %148 = arith.maximumf %146, %147 : vector<2x64xf32>
    %c0_115 = arith.constant 0 : index
    %c0_116 = arith.constant 0 : index
    %c0_117 = arith.constant 0 : index
    %149 = vector.load %arg8[%c0_115, %c0_116, %c0_117] : memref<4x64x32xf32, #tpu.memory_space<vmem>>, vector<1x64x32xf32>
    %150 = vector.shape_cast %149 : vector<1x64x32xf32> to vector<64x32xf32>
    %cst_118 = arith.constant dense<0.000000e+00> : vector<2x32xf32>
    %151 = tpu.matmul %148, %150, %cst_118 {dimension_numbers = #tpu.dot_dimension_numbers<[1], [0], [0], [1], [0, 0, 1, 1], [], []>} : vector<2x64xf32>, vector<64x32xf32>, vector<2x32xf32> -> vector<2x32xf32>
    %152 = vector.extract_strided_slice %145 {offsets = [4, 0], sizes = [2, 64], strides = [1, 1]} : vector<16x64xf32> to vector<2x64xf32>
    %153 = vector.extract_strided_slice %145 {offsets = [6, 0], sizes = [2, 64], strides = [1, 1]} : vector<16x64xf32> to vector<2x64xf32>
    %154 = arith.maximumf %152, %153 : vector<2x64xf32>
    %c1_119 = arith.constant 1 : index
    %c0_120 = arith.constant 0 : index
    %c0_121 = arith.constant 0 : index
    %155 = vector.load %arg8[%c1_119, %c0_120, %c0_121] : memref<4x64x32xf32, #tpu.memory_space<vmem>>, vector<1x64x32xf32>
    %156 = vector.shape_cast %155 : vector<1x64x32xf32> to vector<64x32xf32>
    %cst_122 = arith.constant dense<0.000000e+00> : vector<2x32xf32>
    %157 = tpu.matmul %154, %156, %cst_122 {dimension_numbers = #tpu.dot_dimension_numbers<[1], [0], [0], [1], [0, 0, 1, 1], [], []>} : vector<2x64xf32>, vector<64x32xf32>, vector<2x32xf32> -> vector<2x32xf32>
    %158 = arith.addf %151, %157 : vector<2x32xf32>
    %159 = vector.extract_strided_slice %145 {offsets = [8, 0], sizes = [2, 64], strides = [1, 1]} : vector<16x64xf32> to vector<2x64xf32>
    %160 = vector.extract_strided_slice %145 {offsets = [10, 0], sizes = [2, 64], strides = [1, 1]} : vector<16x64xf32> to vector<2x64xf32>
    %161 = arith.maximumf %159, %160 : vector<2x64xf32>
    %c2_123 = arith.constant 2 : index
    %c0_124 = arith.constant 0 : index
    %c0_125 = arith.constant 0 : index
    %162 = vector.load %arg8[%c2_123, %c0_124, %c0_125] : memref<4x64x32xf32, #tpu.memory_space<vmem>>, vector<1x64x32xf32>
    %163 = vector.shape_cast %162 : vector<1x64x32xf32> to vector<64x32xf32>
    %cst_126 = arith.constant dense<0.000000e+00> : vector<2x32xf32>
    %164 = tpu.matmul %161, %163, %cst_126 {dimension_numbers = #tpu.dot_dimension_numbers<[1], [0], [0], [1], [0, 0, 1, 1], [], []>} : vector<2x64xf32>, vector<64x32xf32>, vector<2x32xf32> -> vector<2x32xf32>
    %165 = arith.addf %158, %164 : vector<2x32xf32>
    %166 = vector.extract_strided_slice %145 {offsets = [12, 0], sizes = [2, 64], strides = [1, 1]} : vector<16x64xf32> to vector<2x64xf32>
    %167 = vector.extract_strided_slice %145 {offsets = [14, 0], sizes = [2, 64], strides = [1, 1]} : vector<16x64xf32> to vector<2x64xf32>
    %168 = arith.maximumf %166, %167 : vector<2x64xf32>
    %c3_127 = arith.constant 3 : index
    %c0_128 = arith.constant 0 : index
    %c0_129 = arith.constant 0 : index
    %169 = vector.load %arg8[%c3_127, %c0_128, %c0_129] : memref<4x64x32xf32, #tpu.memory_space<vmem>>, vector<1x64x32xf32>
    %170 = vector.shape_cast %169 : vector<1x64x32xf32> to vector<64x32xf32>
    %cst_130 = arith.constant dense<0.000000e+00> : vector<2x32xf32>
    %171 = tpu.matmul %168, %170, %cst_130 {dimension_numbers = #tpu.dot_dimension_numbers<[1], [0], [0], [1], [0, 0, 1, 1], [], []>} : vector<2x64xf32>, vector<64x32xf32>, vector<2x32xf32> -> vector<2x32xf32>
    %172 = arith.addf %165, %171 : vector<2x32xf32>
    %c0_131 = arith.constant 0 : index
    %c0_132 = arith.constant 0 : index
    %173 = vector.load %arg9[%c0_131, %c0_132] : memref<1x32xf32, #tpu.memory_space<vmem>>, vector<1x32xf32>
    %174 = vector.broadcast %173 : vector<1x32xf32> to vector<2x32xf32>
    %175 = arith.addf %172, %174 : vector<2x32xf32>
    %cst_133 = arith.constant 0.000000e+00 : f32
    %176 = vector.broadcast %cst_133 : f32 to vector<2x32xf32>
    %177 = arith.maximumf %175, %176 : vector<2x32xf32>
    %c0_134 = arith.constant 0 : index
    %c0_135 = arith.constant 0 : index
    %178 = vector.load %arg10[%c0_134, %c0_135] : memref<32x16xf32, #tpu.memory_space<vmem>>, vector<32x16xf32>
    %cst_136 = arith.constant dense<0.000000e+00> : vector<2x16xf32>
    %179 = tpu.matmul %177, %178, %cst_136 {dimension_numbers = #tpu.dot_dimension_numbers<[1], [0], [0], [1], [0, 0, 1, 1], [], []>} : vector<2x32xf32>, vector<32x16xf32>, vector<2x16xf32> -> vector<2x16xf32>
    %c0_137 = arith.constant 0 : index
    %c0_138 = arith.constant 0 : index
    %180 = vector.load %arg11[%c0_137, %c0_138] : memref<1x16xf32, #tpu.memory_space<vmem>>, vector<1x16xf32>
    %181 = vector.broadcast %180 : vector<1x16xf32> to vector<2x16xf32>
    %182 = arith.addf %179, %181 : vector<2x16xf32>
    %cst_139 = arith.constant 0.000000e+00 : f32
    %183 = vector.broadcast %cst_139 : f32 to vector<2x16xf32>
    %184 = arith.maximumf %182, %183 : vector<2x16xf32>
    %c0_140 = arith.constant 0 : index
    %c0_141 = arith.constant 0 : index
    %185 = vector.load %arg12[%c0_140, %c0_141] : memref<16x10xf32, #tpu.memory_space<vmem>>, vector<16x10xf32>
    %cst_142 = arith.constant dense<0.000000e+00> : vector<2x10xf32>
    %186 = tpu.matmul %184, %185, %cst_142 {dimension_numbers = #tpu.dot_dimension_numbers<[1], [0], [0], [1], [0, 0, 1, 1], [], []>} : vector<2x16xf32>, vector<16x10xf32>, vector<2x10xf32> -> vector<2x10xf32>
    %c0_143 = arith.constant 0 : index
    %c0_144 = arith.constant 0 : index
    %187 = vector.load %arg13[%c0_143, %c0_144] : memref<1x10xf32, #tpu.memory_space<vmem>>, vector<1x10xf32>
    %188 = vector.broadcast %187 : vector<1x10xf32> to vector<2x10xf32>
    %189 = arith.addf %186, %188 : vector<2x10xf32>
    %c0_145 = arith.constant 0 : index
    %c0_146 = arith.constant 0 : index
    %190 = vector.load %arg14[%c0_145, %c0_146] : memref<2x10xf32, #tpu.memory_space<vmem>>, vector<2x10xf32>
    tpu.vector_store %arg14[%c0_145, %c0_146], %189 {strides = array<i32>} : memref<2x10xf32, #tpu.memory_space<vmem>>, vector<2x10xf32>,
    return
  }
  func.func @transform_0(%arg0: i32) -> (i32, i32) {
    %c0_i32 = arith.constant 0 : i32
    %c0_i32_0 = arith.constant 0 : i32
    %c0_i32_1 = arith.constant 0 : i32
    return %c0_i32, %c0_i32_0 : i32, i32
  }
  func.func @transform_1(%arg0: i32) -> (i32, i32, i32) {
    %c0_i32 = arith.constant 0 : i32
    %c0_i32_0 = arith.constant 0 : i32
    %c0_i32_1 = arith.constant 0 : i32
    %c0_i32_2 = arith.constant 0 : i32
    return %c0_i32, %c0_i32_0, %c0_i32_1 : i32, i32, i32
  }
  func.func @transform_2(%arg0: i32) -> (i32, i32, i32) {
    %c0_i32 = arith.constant 0 : i32
    %c0_i32_0 = arith.constant 0 : i32
    %c0_i32_1 = arith.constant 0 : i32
    %c0_i32_2 = arith.constant 0 : i32
    return %c0_i32, %c0_i32_0, %c0_i32_1 : i32, i32, i32
  }
  func.func @transform_3(%arg0: i32) -> (i32, i32) {
    %c0_i32 = arith.constant 0 : i32
    %c0_i32_0 = arith.constant 0 : i32
    %c0_i32_1 = arith.constant 0 : i32
    return %c0_i32, %c0_i32_0 : i32, i32
  }
  func.func @transform_4(%arg0: i32) -> (i32, i32, i32) {
    %c0_i32 = arith.constant 0 : i32
    %c0_i32_0 = arith.constant 0 : i32
    %c0_i32_1 = arith.constant 0 : i32
    %c0_i32_2 = arith.constant 0 : i32
    return %c0_i32, %c0_i32_0, %c0_i32_1 : i32, i32, i32
  }
  func.func @transform_5(%arg0: i32) -> (i32, i32, i32) {
    %c0_i32 = arith.constant 0 : i32
    %c0_i32_0 = arith.constant 0 : i32
    %c0_i32_1 = arith.constant 0 : i32
    %c0_i32_2 = arith.constant 0 : i32
    return %c0_i32, %c0_i32_0, %c0_i32_1 : i32, i32, i32
  }
  func.func @transform_6(%arg0: i32) -> (i32, i32) {
    %c0_i32 = arith.constant 0 : i32
    %c0_i32_0 = arith.constant 0 : i32
    %c0_i32_1 = arith.constant 0 : i32
    return %c0_i32, %c0_i32_0 : i32, i32
  }
  func.func @transform_7(%arg0: i32) -> (i32, i32, i32) {
    %c0_i32 = arith.constant 0 : i32
    %c0_i32_0 = arith.constant 0 : i32
    %c0_i32_1 = arith.constant 0 : i32
    %c0_i32_2 = arith.constant 0 : i32
    return %c0_i32, %c0_i32_0, %c0_i32_1 : i32, i32, i32
  }
  func.func @transform_8(%arg0: i32) -> (i32, i32) {
    %c0_i32 = arith.constant 0 : i32
    %c0_i32_0 = arith.constant 0 : i32
    %c0_i32_1 = arith.constant 0 : i32
    return %c0_i32, %c0_i32_0 : i32, i32
  }
  func.func @transform_9(%arg0: i32) -> (i32, i32) {
    %c0_i32 = arith.constant 0 : i32
    %c0_i32_0 = arith.constant 0 : i32
    %c0_i32_1 = arith.constant 0 : i32
    return %c0_i32, %c0_i32_0 : i32, i32
  }
  func.func @transform_10(%arg0: i32) -> (i32, i32) {
    %c0_i32 = arith.constant 0 : i32
    %c0_i32_0 = arith.constant 0 : i32
    %c0_i32_1 = arith.constant 0 : i32
    return %c0_i32, %c0_i32_0 : i32, i32
  }
  func.func @transform_11(%arg0: i32) -> (i32, i32) {
    %c0_i32 = arith.constant 0 : i32
    %c0_i32_0 = arith.constant 0 : i32
    %c0_i32_1 = arith.constant 0 : i32
    return %c0_i32, %c0_i32_0 : i32, i32
  }
  func.func @transform_12(%arg0: i32) -> (i32, i32) {
    %c0_i32 = arith.constant 0 : i32
    %c0_i32_0 = arith.constant 0 : i32
    %c0_i32_1 = arith.constant 0 : i32
    return %c0_i32, %c0_i32_0 : i32, i32
  }
  func.func @transform_13(%arg0: i32) -> (i32, i32) {
    %c0_i32 = arith.constant 0 : i32
    %c0_i32_0 = arith.constant 0 : i32
    %c0_i32_1 = arith.constant 0 : i32
    return %c0_i32, %c0_i32_0 : i32, i32
  }
}

</mosaic_0001>

<llo_original>
// kernel: forward.1
$region0: #{forward.1}
  #allocation0 [shape = 'u32[]', space=smem, size = 0x4, offset = 0x4, fixed_abs, tag = 'smem constant byte address 0x4 - core index']
  #allocation1 [shape = 'u32[72,128]{1,0:T(1,128)}', space=vmem, size = 0x9000, scoped, tag = 'internal scratch']
  #allocation2 [shape = 'f32[24,72]{1,0:T(8,128)}', space=vmem, size = 0x3000, scoped, tag = 'scratch operand']
  %s0 = inlined_call_operand.vmem [shape: f32[56,28], index: 0, kind: input, shape index: {}]
  %s1 = inlined_call_operand.vmem [shape: f32[5,28,72], index: 1, kind: input, shape index: {}]
  %s2 = inlined_call_operand.vmem [shape: f32[5,28,72], index: 2, kind: input, shape index: {}]
  %s3 = inlined_call_operand.vmem [shape: f32[1,72], index: 3, kind: input, shape index: {}]
  %s4 = inlined_call_operand.vmem [shape: f32[5,72,64], index: 4, kind: input, shape index: {}]
  %s5 = inlined_call_operand.vmem [shape: f32[5,72,64], index: 5, kind: input, shape index: {}]
  %s6 = inlined_call_operand.vmem [shape: f32[1,64], index: 6, kind: input, shape index: {}]
  %s7 = inlined_call_operand.vmem [shape: f32[4,64,32], index: 7, kind: input, shape index: {}]
  %s8 = inlined_call_operand.vmem [shape: f32[1,32], index: 8, kind: input, shape index: {}]
  %s9 = inlined_call_operand.vmem [shape: f32[32,16], index: 9, kind: input, shape index: {}]
  %s10 = inlined_call_operand.vmem [shape: f32[1,16], index: 10, kind: input, shape index: {}]
  %s11 = inlined_call_operand.vmem [shape: f32[16,10], index: 11, kind: input, shape index: {}]
  %s12 = inlined_call_operand.vmem [shape: f32[1,10], index: 12, kind: input, shape index: {}]
  %s13 = inlined_call_operand.hbm [shape: f32[2,10], index: 13, kind: output, shape index: {}]
  %s14 = sld [smem:[#allocation0]]
  $region62: #{forward.1} parent=0
    _
  %s16 = ssub.s32 1, %s14
  %s17 = scalar_select 0, %s16, %s14
  $region1: #{forward.1} parent=0
    #allocation3 [shape = 'u8[1024]{0}', space=vmem, size = 0x400, scoped, tag = 'output window, operand 0, single buffered']
    #allocation4 [shape = 's32[1]{0}', space=sflag, size = 0x4, scoped, tag = 'scoped memory for forward.1']
    %18 = vsyncpa [#allocation4], 0
    // Predicated region
    $region2: #{forward.1} parent=1 // pred_check
      _
    $region3: #{forward.1} parent=1 // pred_check_branch
      %20 = sbr.rel (0) target = $region5
    $region4: #{forward.1} parent=1 // pred_region
      _
    $region5: #{forward.1} parent=1 // pred_fallthru
      _
    // Predicated region
    $region6: #{forward.1} parent=1 // pred_check
      _
    $region7: #{forward.1} parent=1 // pred_check_branch
      %22 = sbr.rel (0) target = $region9
    $region8: #{forward.1} parent=1 // pred_region
      _
    $region9: #{forward.1} parent=1 // pred_fallthru
      _
    // Predicated region
    $region10: #{forward.1} parent=1 // pred_check
      _
    $region11: #{forward.1} parent=1 // pred_check_branch
      %24 = sbr.rel (0) target = $region13
    $region12: #{forward.1} parent=1 // pred_region
      _
    $region13: #{forward.1} parent=1 // pred_fallthru
      _
    // Predicated region
    $region14: #{forward.1} parent=1 // pred_check
      _
    $region15: #{forward.1} parent=1 // pred_check_branch
      %26 = sbr.rel (0) target = $region17
    $region16: #{forward.1} parent=1 // pred_region
      _
    $region17: #{forward.1} parent=1 // pred_fallthru
      _
    // Predicated region
    $region18: #{forward.1} parent=1 // pred_check
      _
    $region19: #{forward.1} parent=1 // pred_check_branch
      %28 = sbr.rel (0) target = $region21
    $region20: #{forward.1} parent=1 // pred_region
      _
    $region21: #{forward.1} parent=1 // pred_fallthru
      _
    // Predicated region
    $region22: #{forward.1} parent=1 // pred_check
      _
    $region23: #{forward.1} parent=1 // pred_check_branch
      %30 = sbr.rel (0) target = $region25
    $region24: #{forward.1} parent=1 // pred_region
      _
    $region25: #{forward.1} parent=1 // pred_fallthru
      _
    // Predicated region
    $region26: #{forward.1} parent=1 // pred_check
      _
    $region27: #{forward.1} parent=1 // pred_check_branch
      %32 = sbr.rel (0) target = $region29
    $region28: #{forward.1} parent=1 // pred_region
      _
    $region29: #{forward.1} parent=1 // pred_fallthru
      _
    // Predicated region
    $region30: #{forward.1} parent=1 // pred_check
      _
    $region31: #{forward.1} parent=1 // pred_check_branch
      %34 = sbr.rel (0) target = $region33
    $region32: #{forward.1} parent=1 // pred_region
      _
    $region33: #{forward.1} parent=1 // pred_fallthru
      _
    // Predicated region
    $region34: #{forward.1} parent=1 // pred_check
      _
    $region35: #{forward.1} parent=1 // pred_check_branch
      %36 = sbr.rel (0) target = $region37
    $region36: #{forward.1} parent=1 // pred_region
      _
    $region37: #{forward.1} parent=1 // pred_fallthru
      _
    // Predicated region
    $region38: #{forward.1} parent=1 // pred_check
      _
    $region39: #{forward.1} parent=1 // pred_check_branch
      %38 = sbr.rel (0) target = $region41
    $region40: #{forward.1} parent=1 // pred_region
      _
    $region41: #{forward.1} parent=1 // pred_fallthru
      _
    // Predicated region
    $region42: #{forward.1} parent=1 // pred_check
      _
    $region43: #{forward.1} parent=1 // pred_check_branch
      %40 = sbr.rel (0) target = $region45
    $region44: #{forward.1} parent=1 // pred_region
      _
    $region45: #{forward.1} parent=1 // pred_fallthru
      _
    // Predicated region
    $region46: #{forward.1} parent=1 // pred_check
      _
    $region47: #{forward.1} parent=1 // pred_check_branch
      %42 = sbr.rel (0) target = $region49
    $region48: #{forward.1} parent=1 // pred_region
      _
    $region49: #{forward.1} parent=1 // pred_fallthru
      _
    // Predicated region
    $region50: #{forward.1} parent=1 // pred_check
      _
    $region51: #{forward.1} parent=1 // pred_check_branch
      %44 = sbr.rel (0) target = $region53
    $region52: #{forward.1} parent=1 // pred_region
      _
    $region53: #{forward.1} parent=1 // pred_fallthru
      _
    %v45 = vld [vmem:[%s0] sm:$0xff]
    %v46 = vld [vmem:[%s0 + $0x8] sm:$0xff]
    %v47 = vld [vmem:[%s0 + $0x10] sm:$0xff]
    %v48 = vld [vmem:[%s0 + $0x18] sm:$0xff]
    %v49 = vld [vmem:[%s0 + $0x20] sm:$0xff]
    %v50 = vld [vmem:[%s0 + $0x28] sm:$0xff]
    %v51 = vld [vmem:[%s1] sm:$0xff]
    %v52 = vld [vmem:[%s1 + $0x8] sm:$0xff]
    %v53 = vld [vmem:[%s1 + $0x10] sm:$0xff]
    %v54 = vld [vmem:[%s1 + $0x18] sm:$0xf]
    %v55 = vld [vmem:[%s2] sm:$0xff]
    %v56 = vld [vmem:[%s2 + $0x8] sm:$0xff]
    %v57 = vld [vmem:[%s2 + $0x10] sm:$0xff]
    %v58 = vld [vmem:[%s2 + $0x18] sm:$0xf]
    %v59 = vld [vmem:[%s0 + $0x2] sm:$0xff]
    %v60 = vld [vmem:[%s0 + $0xa] sm:$0xff]
    %v61 = vld [vmem:[%s0 + $0x12] sm:$0xff]
    %v62 = vld [vmem:[%s0 + $0x1a] sm:$0xff]
    %v63 = vld [vmem:[%s0 + $0x22] sm:$0xff]
    %v64 = vld [vmem:[%s0 + $0x2a] sm:$0xff]
    %s65 = scalar_lea.vmem %s1, 32
    %v66 = vld [vmem:[%s65] sm:$0xff]
    %v67 = vld [vmem:[%s65 + $0x8] sm:$0xff]
    %v68 = vld [vmem:[%s65 + $0x10] sm:$0xff]
    %v69 = vld [vmem:[%s65 + $0x18] sm:$0xf]
    %vm70 = vcmask 228352
    %v72 = vsel %vm70, %v59, 0
    %v75 = vsel %vm70, %v60, 0
    %v78 = vsel %vm70, %v61, 0
    %v81 = vsel %vm70, %v62, 0
    %v84 = vsel %vm70, %v63, 0
    %v87 = vsel %vm70, %v64, 0
    %vm89 = vcmask 1043456
    %v91 = vsel %vm89, %v69, 0
    %93 = vmatpush.msra.mxu0 0.0
    %94 = vmatpush.msra.mxu0 0.0
    %95 = vmatpush.msra.mxu0 0.0
    %96 = vmatpush.msra.mxu0 0.0
    %97 = vmatpush.msra.mxu0 0.0
    %98 = vmatpush.msra.mxu0 0.0
    %99 = vmatpush.msra.mxu0 0.0
    %100 = vmatpush.msra.mxu0 0.0
    %101 = vmatpush.msra.mxu0 0.0
    %102 = vmatpush.msra.mxu0 0.0
    %103 = vmatpush.msra.mxu0 0.0
    %104 = vmatpush.msra.mxu0 0.0
    %105 = vmatpush.msra.mxu0 %v91
    %106 = vmatpush.msra.mxu0 %v68
    %107 = vmatpush.msra.mxu0 %v67
    %108 = vmatpush.msra.mxu0 %v66
    %109 = vmatmul.f32.gmra.mxu0 %v72
    %v110 = vpop.f32.mrf.mxu0
    %v111 = vadd.f32 0.0, %v110
    %112 = vmatmul.f32.gmra.mxu0 %v75
    %v113 = vpop.f32.mrf.mxu0
    %v114 = vadd.f32 0.0, %v113
    %115 = vmatmul.f32.gmra.mxu0 %v78
    %v116 = vpop.f32.mrf.mxu0
    %v117 = vadd.f32 0.0, %v116
    %118 = vmatmul.f32.gmra.mxu0 %v81
    %v119 = vpop.f32.mrf.mxu0
    %v120 = vadd.f32 0.0, %v119
    %121 = vmatmul.f32.gmra.mxu0 %v84
    %v122 = vpop.f32.mrf.mxu0
    %v123 = vadd.f32 0.0, %v122
    %124 = vmatmul.f32.gmra.mxu0 %v87
    %v125 = vpop.f32.mrf.mxu0
    %v126 = vadd.f32 0.0, %v125
    %127 = vdwg.mxu0
    %s128 = scalar_lea.vmem %s2, 32
    %v129 = vld [vmem:[%s128] sm:$0xff]
    %v130 = vld [vmem:[%s128 + $0x8] sm:$0xff]
    %v131 = vld [vmem:[%s128 + $0x10] sm:$0xff]
    %v132 = vld [vmem:[%s128 + $0x18] sm:$0xf]
    %v134 = vsel %vm89, %v132, 0
    %136 = vmatpush.msra.mxu0 0.0
    %137 = vmatpush.msra.mxu0 0.0
    %138 = vmatpush.msra.mxu0 0.0
    %139 = vmatpush.msra.mxu0 0.0
    %140 = vmatpush.msra.mxu0 0.0
    %141 = vmatpush.msra.mxu0 0.0
    %142 = vmatpush.msra.mxu0 0.0
    %143 = vmatpush.msra.mxu0 0.0
    %144 = vmatpush.msra.mxu0 0.0
    %145 = vmatpush.msra.mxu0 0.0
    %146 = vmatpush.msra.mxu0 0.0
    %147 = vmatpush.msra.mxu0 0.0
    %148 = vmatpush.msra.mxu0 %v134
    %149 = vmatpush.msra.mxu0 %v131
    %150 = vmatpush.msra.mxu0 %v130
    %151 = vmatpush.msra.mxu0 %v129
    %152 = vmatmul.f32.gmra.mxu0 %v72
    %v153 = vpop.f32.mrf.mxu0
    %v154 = vadd.f32 0.0, %v153
    %155 = vmatmul.f32.gmra.mxu0 %v75
    %v156 = vpop.f32.mrf.mxu0
    %v157 = vadd.f32 0.0, %v156
    %158 = vmatmul.f32.gmra.mxu0 %v78
    %v159 = vpop.f32.mrf.mxu0
    %v160 = vadd.f32 0.0, %v159
    %161 = vmatmul.f32.gmra.mxu0 %v81
    %v162 = vpop.f32.mrf.mxu0
    %v163 = vadd.f32 0.0, %v162
    %164 = vmatmul.f32.gmra.mxu0 %v84
    %v165 = vpop.f32.mrf.mxu0
    %v166 = vadd.f32 0.0, %v165
    %167 = vmatmul.f32.gmra.mxu0 %v87
    %v168 = vpop.f32.mrf.mxu0
    %v169 = vadd.f32 0.0, %v168
    %170 = vdwg.mxu0
    %v172 = vsel %vm70, %v45, 0
    %v175 = vsel %vm70, %v46, 0
    %v178 = vsel %vm70, %v47, 0
    %v181 = vsel %vm70, %v48, 0
    %v184 = vsel %vm70, %v49, 0
    %v187 = vsel %vm70, %v50, 0
    %v190 = vsel %vm89, %v54, 0
    %192 = vmatpush.msra.mxu0 0.0
    %193 = vmatpush.msra.mxu0 0.0
    %194 = vmatpush.msra.mxu0 0.0
    %195 = vmatpush.msra.mxu0 0.0
    %196 = vmatpush.msra.mxu0 0.0
    %197 = vmatpush.msra.mxu0 0.0
    %198 = vmatpush.msra.mxu0 0.0
    %199 = vmatpush.msra.mxu0 0.0
    %200 = vmatpush.msra.mxu0 0.0
    %201 = vmatpush.msra.mxu0 0.0
    %202 = vmatpush.msra.mxu0 0.0
    %203 = vmatpush.msra.mxu0 0.0
    %204 = vmatpush.msra.mxu0 %v190
    %205 = vmatpush.msra.mxu0 %v53
    %206 = vmatpush.msra.mxu0 %v52
    %207 = vmatpush.msra.mxu0 %v51
    %208 = vmatmul.f32.gmra.mxu0 %v172
    %v209 = vpop.f32.mrf.mxu0
    %v210 = vadd.f32 %v111, %v209
    %211 = vmatmul.f32.gmra.mxu0 %v175
    %v212 = vpop.f32.mrf.mxu0
    %v213 = vadd.f32 %v114, %v212
    %214 = vmatmul.f32.gmra.mxu0 %v178
    %v215 = vpop.f32.mrf.mxu0
    %v216 = vadd.f32 %v117, %v215
    %217 = vmatmul.f32.gmra.mxu0 %v181
    %v218 = vpop.f32.mrf.mxu0
    %v219 = vadd.f32 %v120, %v218
    %220 = vmatmul.f32.gmra.mxu0 %v184
    %v221 = vpop.f32.mrf.mxu0
    %v222 = vadd.f32 %v123, %v221
    %223 = vmatmul.f32.gmra.mxu0 %v187
    %v224 = vpop.f32.mrf.mxu0
    %v225 = vadd.f32 %v126, %v224
    %226 = vdwg.mxu0
    %v228 = vsel %vm89, %v58, 0
    %230 = vmatpush.msra.mxu0 0.0
    %231 = vmatpush.msra.mxu0 0.0
    %232 = vmatpush.msra.mxu0 0.0
    %233 = vmatpush.msra.mxu0 0.0
    %234 = vmatpush.msra.mxu0 0.0
    %235 = vmatpush.msra.mxu0 0.0
    %236 = vmatpush.msra.mxu0 0.0
    %237 = vmatpush.msra.mxu0 0.0
    %238 = vmatpush.msra.mxu0 0.0
    %239 = vmatpush.msra.mxu0 0.0
    %240 = vmatpush.msra.mxu0 0.0
    %241 = vmatpush.msra.mxu0 0.0
    %242 = vmatpush.msra.mxu0 %v228
    %243 = vmatpush.msra.mxu0 %v57
    %244 = vmatpush.msra.mxu0 %v56
    %245 = vmatpush.msra.mxu0 %v55
    %246 = vmatmul.f32.gmra.mxu0 %v172
    %v247 = vpop.f32.mrf.mxu0
    %v248 = vadd.f32 %v154, %v247
    %249 = vmatmul.f32.gmra.mxu0 %v175
    %v250 = vpop.f32.mrf.mxu0
    %v251 = vadd.f32 %v157, %v250
    %252 = vmatmul.f32.gmra.mxu0 %v178
    %v253 = vpop.f32.mrf.mxu0
    %v254 = vadd.f32 %v160, %v253
    %255 = vmatmul.f32.gmra.mxu0 %v181
    %v256 = vpop.f32.mrf.mxu0
    %v257 = vadd.f32 %v163, %v256
    %258 = vmatmul.f32.gmra.mxu0 %v184
    %v259 = vpop.f32.mrf.mxu0
    %v260 = vadd.f32 %v166, %v259
    %261 = vmatmul.f32.gmra.mxu0 %v187
    %v262 = vpop.f32.mrf.mxu0
    %v263 = vadd.f32 %v169, %v262
    %264 = vdwg.mxu0
    %v265 = vld [vmem:[%s0 + $0x4] sm:$0xff]
    %v266 = vld [vmem:[%s0 + $0xc] sm:$0xff]
    %v267 = vld [vmem:[%s0 + $0x14] sm:$0xff]
    %v268 = vld [vmem:[%s0 + $0x1c] sm:$0xff]
    %v269 = vld [vmem:[%s0 + $0x24] sm:$0xff]
    %v270 = vld [vmem:[%s0 + $0x2c] sm:$0xff]
    %s271 = scalar_lea.vmem %s1, 64
    %v272 = vld [vmem:[%s271] sm:$0xff]
    %v273 = vld [vmem:[%s271 + $0x8] sm:$0xff]
    %v274 = vld [vmem:[%s271 + $0x10] sm:$0xff]
    %v275 = vld [vmem:[%s271 + $0x18] sm:$0xf]
    %v277 = vsel %vm70, %v265, 0
    %v280 = vsel %vm70, %v266, 0
    %v283 = vsel %vm70, %v267, 0
    %v286 = vsel %vm70, %v268, 0
    %v289 = vsel %vm70, %v269, 0
    %v292 = vsel %vm70, %v270, 0
    %v295 = vsel %vm89, %v275, 0
    %297 = vmatpush.msra.mxu0 0.0
    %298 = vmatpush.msra.mxu0 0.0
    %299 = vmatpush.msra.mxu0 0.0
    %300 = vmatpush.msra.mxu0 0.0
    %301 = vmatpush.msra.mxu0 0.0
    %302 = vmatpush.msra.mxu0 0.0
    %303 = vmatpush.msra.mxu0 0.0
    %304 = vmatpush.msra.mxu0 0.0
    %305 = vmatpush.msra.mxu0 0.0
    %306 = vmatpush.msra.mxu0 0.0
    %307 = vmatpush.msra.mxu0 0.0
    %308 = vmatpush.msra.mxu0 0.0
    %309 = vmatpush.msra.mxu0 %v295
    %310 = vmatpush.msra.mxu0 %v274
    %311 = vmatpush.msra.mxu0 %v273
    %312 = vmatpush.msra.mxu0 %v272
    %313 = vmatmul.f32.gmra.mxu0 %v277
    %v314 = vpop.f32.mrf.mxu0
    %v315 = vadd.f32 0.0, %v314
    %316 = vmatmul.f32.gmra.mxu0 %v280
    %v317 = vpop.f32.mrf.mxu0
    %v318 = vadd.f32 0.0, %v317
    %319 = vmatmul.f32.gmra.mxu0 %v283
    %v320 = vpop.f32.mrf.mxu0
    %v321 = vadd.f32 0.0, %v320
    %322 = vmatmul.f32.gmra.mxu0 %v286
    %v323 = vpop.f32.mrf.mxu0
    %v324 = vadd.f32 0.0, %v323
    %325 = vmatmul.f32.gmra.mxu0 %v289
    %v326 = vpop.f32.mrf.mxu0
    %v327 = vadd.f32 0.0, %v326
    %328 = vmatmul.f32.gmra.mxu0 %v292
    %v329 = vpop.f32.mrf.mxu0
    %v330 = vadd.f32 0.0, %v329
    %331 = vdwg.mxu0
    %s332 = scalar_lea.vmem %s2, 64
    %v333 = vld [vmem:[%s332] sm:$0xff]
    %v334 = vld [vmem:[%s332 + $0x8] sm:$0xff]
    %v335 = vld [vmem:[%s332 + $0x10] sm:$0xff]
    %v336 = vld [vmem:[%s332 + $0x18] sm:$0xf]
    %v338 = vsel %vm89, %v336, 0
    %340 = vmatpush.msra.mxu0 0.0
    %341 = vmatpush.msra.mxu0 0.0
    %342 = vmatpush.msra.mxu0 0.0
    %343 = vmatpush.msra.mxu0 0.0
    %344 = vmatpush.msra.mxu0 0.0
    %345 = vmatpush.msra.mxu0 0.0
    %346 = vmatpush.msra.mxu0 0.0
    %347 = vmatpush.msra.mxu0 0.0
    %348 = vmatpush.msra.mxu0 0.0
    %349 = vmatpush.msra.mxu0 0.0
    %350 = vmatpush.msra.mxu0 0.0
    %351 = vmatpush.msra.mxu0 0.0
    %352 = vmatpush.msra.mxu0 %v338
    %353 = vmatpush.msra.mxu0 %v335
    %354 = vmatpush.msra.mxu0 %v334
    %355 = vmatpush.msra.mxu0 %v333
    %356 = vmatmul.f32.gmra.mxu0 %v277
    %v357 = vpop.f32.mrf.mxu0
    %v358 = vadd.f32 0.0, %v357
    %359 = vmatmul.f32.gmra.mxu0 %v280
    %v360 = vpop.f32.mrf.mxu0
    %v361 = vadd.f32 0.0, %v360
    %362 = vmatmul.f32.gmra.mxu0 %v283
    %v363 = vpop.f32.mrf.mxu0
    %v364 = vadd.f32 0.0, %v363
    %365 = vmatmul.f32.gmra.mxu0 %v286
    %v366 = vpop.f32.mrf.mxu0
    %v367 = vadd.f32 0.0, %v366
    %368 = vmatmul.f32.gmra.mxu0 %v289
    %v369 = vpop.f32.mrf.mxu0
    %v370 = vadd.f32 0.0, %v369
    %371 = vmatmul.f32.gmra.mxu0 %v292
    %v372 = vpop.f32.mrf.mxu0
    %v373 = vadd.f32 0.0, %v372
    %374 = vdwg.mxu0
    %v375 = vadd.f32 %v210, %v315
    %v376 = vadd.f32 %v213, %v318
    %v377 = vadd.f32 %v216, %v321
    %v378 = vadd.f32 %v219, %v324
    %v379 = vadd.f32 %v222, %v327
    %v380 = vadd.f32 %v225, %v330
    %v381 = vadd.f32 %v248, %v358
    %v382 = vadd.f32 %v251, %v361
    %v383 = vadd.f32 %v254, %v364
    %v384 = vadd.f32 %v257, %v367
    %v385 = vadd.f32 %v260, %v370
    %v386 = vadd.f32 %v263, %v373
    %v387 = vld [vmem:[%s0 + $0x6] sm:$0xff]
    %v388 = vld [vmem:[%s0 + $0xe] sm:$0xff]
    %v389 = vld [vmem:[%s0 + $0x16] sm:$0xff]
    %v390 = vld [vmem:[%s0 + $0x1e] sm:$0xff]
    %v391 = vld [vmem:[%s0 + $0x26] sm:$0xff]
    %v392 = vld [vmem:[%s0 + $0x2e] sm:$0xff]
    %s393 = scalar_lea.vmem %s1, 96
    %v394 = vld [vmem:[%s393] sm:$0xff]
    %v395 = vld [vmem:[%s393 + $0x8] sm:$0xff]
    %v396 = vld [vmem:[%s393 + $0x10] sm:$0xff]
    %v397 = vld [vmem:[%s393 + $0x18] sm:$0xf]
    %v399 = vsel %vm70, %v387, 0
    %v402 = vsel %vm70, %v388, 0
    %v405 = vsel %vm70, %v389, 0
    %v408 = vsel %vm70, %v390, 0
    %v411 = vsel %vm70, %v391, 0
    %v414 = vsel %vm70, %v392, 0
    %v417 = vsel %vm89, %v397, 0
    %419 = vmatpush.msra.mxu0 0.0
    %420 = vmatpush.msra.mxu0 0.0
    %421 = vmatpush.msra.mxu0 0.0
    %422 = vmatpush.msra.mxu0 0.0
    %423 = vmatpush.msra.mxu0 0.0
    %424 = vmatpush.msra.mxu0 0.0
    %425 = vmatpush.msra.mxu0 0.0
    %426 = vmatpush.msra.mxu0 0.0
    %427 = vmatpush.msra.mxu0 0.0
    %428 = vmatpush.msra.mxu0 0.0
    %429 = vmatpush.msra.mxu0 0.0
    %430 = vmatpush.msra.mxu0 0.0
    %431 = vmatpush.msra.mxu0 %v417
    %432 = vmatpush.msra.mxu0 %v396
    %433 = vmatpush.msra.mxu0 %v395
    %434 = vmatpush.msra.mxu0 %v394
    %435 = vmatmul.f32.gmra.mxu0 %v399
    %v436 = vpop.f32.mrf.mxu0
    %v437 = vadd.f32 0.0, %v436
    %438 = vmatmul.f32.gmra.mxu0 %v402
    %v439 = vpop.f32.mrf.mxu0
    %v440 = vadd.f32 0.0, %v439
    %441 = vmatmul.f32.gmra.mxu0 %v405
    %v442 = vpop.f32.mrf.mxu0
    %v443 = vadd.f32 0.0, %v442
    %444 = vmatmul.f32.gmra.mxu0 %v408
    %v445 = vpop.f32.mrf.mxu0
    %v446 = vadd.f32 0.0, %v445
    %447 = vmatmul.f32.gmra.mxu0 %v411
    %v448 = vpop.f32.mrf.mxu0
    %v449 = vadd.f32 0.0, %v448
    %450 = vmatmul.f32.gmra.mxu0 %v414
    %v451 = vpop.f32.mrf.mxu0
    %v452 = vadd.f32 0.0, %v451
    %453 = vdwg.mxu0
    %s454 = scalar_lea.vmem %s2, 96
    %v455 = vld [vmem:[%s454] sm:$0xff]
    %v456 = vld [vmem:[%s454 + $0x8] sm:$0xff]
    %v457 = vld [vmem:[%s454 + $0x10] sm:$0xff]
    %v458 = vld [vmem:[%s454 + $0x18] sm:$0xf]
    %v460 = vsel %vm89, %v458, 0
    %462 = vmatpush.msra.mxu0 0.0
    %463 = vmatpush.msra.mxu0 0.0
    %464 = vmatpush.msra.mxu0 0.0
    %465 = vmatpush.msra.mxu0 0.0
    %466 = vmatpush.msra.mxu0 0.0
    %467 = vmatpush.msra.mxu0 0.0
    %468 = vmatpush.msra.mxu0 0.0
    %469 = vmatpush.msra.mxu0 0.0
    %470 = vmatpush.msra.mxu0 0.0
    %471 = vmatpush.msra.mxu0 0.0
    %472 = vmatpush.msra.mxu0 0.0
    %473 = vmatpush.msra.mxu0 0.0
    %474 = vmatpush.msra.mxu0 %v460
    %475 = vmatpush.msra.mxu0 %v457
    %476 = vmatpush.msra.mxu0 %v456
    %477 = vmatpush.msra.mxu0 %v455
    %478 = vmatmul.f32.gmra.mxu0 %v399
    %v479 = vpop.f32.mrf.mxu0
    %v480 = vadd.f32 0.0, %v479
    %481 = vmatmul.f32.gmra.mxu0 %v402
    %v482 = vpop.f32.mrf.mxu0
    %v483 = vadd.f32 0.0, %v482
    %484 = vmatmul.f32.gmra.mxu0 %v405
    %v485 = vpop.f32.mrf.mxu0
    %v486 = vadd.f32 0.0, %v485
    %487 = vmatmul.f32.gmra.mxu0 %v408
    %v488 = vpop.f32.mrf.mxu0
    %v489 = vadd.f32 0.0, %v488
    %490 = vmatmul.f32.gmra.mxu0 %v411
    %v491 = vpop.f32.mrf.mxu0
    %v492 = vadd.f32 0.0, %v491
    %493 = vmatmul.f32.gmra.mxu0 %v414
    %v494 = vpop.f32.mrf.mxu0
    %v495 = vadd.f32 0.0, %v494
    %496 = vdwg.mxu0
    %v497 = vadd.f32 %v375, %v437
    %v498 = vadd.f32 %v376, %v440
    %v499 = vadd.f32 %v377, %v443
    %v500 = vadd.f32 %v378, %v446
    %v501 = vadd.f32 %v379, %v449
    %v502 = vadd.f32 %v380, %v452
    %v503 = vadd.f32 %v381, %v480
    %v504 = vadd.f32 %v382, %v483
    %v505 = vadd.f32 %v383, %v486
    %v506 = vadd.f32 %v384, %v489
    %v507 = vadd.f32 %v385, %v492
    %v508 = vadd.f32 %v386, %v495
    %v509 = vld [vmem:[%s0 + $0x8] sm:$0xff]
    %v510 = vld [vmem:[%s0 + $0x10] sm:$0xff]
    %v511 = vld [vmem:[%s0 + $0x18] sm:$0xff]
    %v512 = vld [vmem:[%s0 + $0x20] sm:$0xff]
    %v513 = vld [vmem:[%s0 + $0x28] sm:$0xff]
    %v514 = vld [vmem:[%s0 + $0x30] sm:$0xff]
    %s515 = scalar_lea.vmem %s1, 128
    %v516 = vld [vmem:[%s515] sm:$0xff]
    %v517 = vld [vmem:[%s515 + $0x8] sm:$0xff]
    %v518 = vld [vmem:[%s515 + $0x10] sm:$0xff]
    %v519 = vld [vmem:[%s515 + $0x18] sm:$0xf]
    %v521 = vsel %vm70, %v509, 0
    %v524 = vsel %vm70, %v510, 0
    %v527 = vsel %vm70, %v511, 0
    %v530 = vsel %vm70, %v512, 0
    %v533 = vsel %vm70, %v513, 0
    %v536 = vsel %vm70, %v514, 0
    %v539 = vsel %vm89, %v519, 0
    %541 = vmatpush.msra.mxu0 0.0
    %542 = vmatpush.msra.mxu0 0.0
    %543 = vmatpush.msra.mxu0 0.0
    %544 = vmatpush.msra.mxu0 0.0
    %545 = vmatpush.msra.mxu0 0.0
    %546 = vmatpush.msra.mxu0 0.0
    %547 = vmatpush.msra.mxu0 0.0
    %548 = vmatpush.msra.mxu0 0.0
    %549 = vmatpush.msra.mxu0 0.0
    %550 = vmatpush.msra.mxu0 0.0
    %551 = vmatpush.msra.mxu0 0.0
    %552 = vmatpush.msra.mxu0 0.0
    %553 = vmatpush.msra.mxu0 %v539
    %554 = vmatpush.msra.mxu0 %v518
    %555 = vmatpush.msra.mxu0 %v517
    %556 = vmatpush.msra.mxu0 %v516
    %557 = vmatmul.f32.gmra.mxu0 %v521
    %v558 = vpop.f32.mrf.mxu0
    %v559 = vadd.f32 0.0, %v558
    %560 = vmatmul.f32.gmra.mxu0 %v524
    %v561 = vpop.f32.mrf.mxu0
    %v562 = vadd.f32 0.0, %v561
    %563 = vmatmul.f32.gmra.mxu0 %v527
    %v564 = vpop.f32.mrf.mxu0
    %v565 = vadd.f32 0.0, %v564
    %566 = vmatmul.f32.gmra.mxu0 %v530
    %v567 = vpop.f32.mrf.mxu0
    %v568 = vadd.f32 0.0, %v567
    %569 = vmatmul.f32.gmra.mxu0 %v533
    %v570 = vpop.f32.mrf.mxu0
    %v571 = vadd.f32 0.0, %v570
    %572 = vmatmul.f32.gmra.mxu0 %v536
    %v573 = vpop.f32.mrf.mxu0
    %v574 = vadd.f32 0.0, %v573
    %575 = vdwg.mxu0
    %s576 = scalar_lea.vmem %s2, 128
    %v577 = vld [vmem:[%s576] sm:$0xff]
    %v578 = vld [vmem:[%s576 + $0x8] sm:$0xff]
    %v579 = vld [vmem:[%s576 + $0x10] sm:$0xff]
    %v580 = vld [vmem:[%s576 + $0x18] sm:$0xf]
    %v582 = vsel %vm89, %v580, 0
    %584 = vmatpush.msra.mxu0 0.0
    %585 = vmatpush.msra.mxu0 0.0
    %586 = vmatpush.msra.mxu0 0.0
    %587 = vmatpush.msra.mxu0 0.0
    %588 = vmatpush.msra.mxu0 0.0
    %589 = vmatpush.msra.mxu0 0.0
    %590 = vmatpush.msra.mxu0 0.0
    %591 = vmatpush.msra.mxu0 0.0
    %592 = vmatpush.msra.mxu0 0.0
    %593 = vmatpush.msra.mxu0 0.0
    %594 = vmatpush.msra.mxu0 0.0
    %595 = vmatpush.msra.mxu0 0.0
    %596 = vmatpush.msra.mxu0 %v582
    %597 = vmatpush.msra.mxu0 %v579
    %598 = vmatpush.msra.mxu0 %v578
    %599 = vmatpush.msra.mxu0 %v577
    %600 = vmatmul.f32.gmra.mxu0 %v521
    %v601 = vpop.f32.mrf.mxu0
    %v602 = vadd.f32 0.0, %v601
    %603 = vmatmul.f32.gmra.mxu0 %v524
    %v604 = vpop.f32.mrf.mxu0
    %v605 = vadd.f32 0.0, %v604
    %606 = vmatmul.f32.gmra.mxu0 %v527
    %v607 = vpop.f32.mrf.mxu0
    %v608 = vadd.f32 0.0, %v607
    %609 = vmatmul.f32.gmra.mxu0 %v530
    %v610 = vpop.f32.mrf.mxu0
    %v611 = vadd.f32 0.0, %v610
    %612 = vmatmul.f32.gmra.mxu0 %v533
    %v613 = vpop.f32.mrf.mxu0
    %v614 = vadd.f32 0.0, %v613
    %615 = vmatmul.f32.gmra.mxu0 %v536
    %v616 = vpop.f32.mrf.mxu0
    %v617 = vadd.f32 0.0, %v616
    %618 = vdwg.mxu0
    %v619 = vadd.f32 %v497, %v559
    %v620 = vadd.f32 %v498, %v562
    %v621 = vadd.f32 %v499, %v565
    %v622 = vadd.f32 %v500, %v568
    %v623 = vadd.f32 %v501, %v571
    %v624 = vadd.f32 %v502, %v574
    %v625 = vadd.f32 %v503, %v602
    %v626 = vadd.f32 %v504, %v605
    %v627 = vadd.f32 %v505, %v608
    %v628 = vadd.f32 %v506, %v611
    %v629 = vadd.f32 %v507, %v614
    %v630 = vadd.f32 %v508, %v617
    %v631 = vmax.f32 %v619, %v625
    %v632 = vmax.f32 %v620, %v626
    %v633 = vmax.f32 %v621, %v627
    %v634 = vmax.f32 %v622, %v628
    %v635 = vmax.f32 %v623, %v629
    %v636 = vmax.f32 %v624, %v630
    %v637 = vld [vmem:[%s3] sm:$0x1]
    %v639 = vperm.slane %v637, 0
    %v641 = vadd.f32 %v631, %v639
    %v642 = vadd.f32 %v632, %v639
    %v643 = vadd.f32 %v633, %v639
    %v644 = vadd.f32 %v634, %v639
    %v645 = vadd.f32 %v635, %v639
    %v646 = vadd.f32 %v636, %v639
    %v647 = vmax.f32 %v641, 0.0
    %v648 = vmax.f32 %v642, 0.0
    %v649 = vmax.f32 %v643, 0.0
    %v650 = vmax.f32 %v644, 0.0
    %v651 = vmax.f32 %v645, 0.0
    %v652 = vmax.f32 %v646, 0.0
    %v654 = vrot.slane %v647, 2
    %v656 = vmax.f32 %v647, %v654
    %vm657 = vcmask 582656
    %658 = vst.msk [vmem:[#allocation2] sm:$0x3] %vm657, %v656
    %vm659 = vcmask 586756
    %660 = vst.msk [vmem:[#allocation2 - $0x2] sm:$0x30] %vm659, %v656
    %v662 = vrot.slane %v648, 2
    %v664 = vmax.f32 %v648, %v662
    %665 = vst.msk [vmem:[#allocation2 + $0x4] sm:$0x3] %vm657, %v664
    %666 = vst.msk [vmem:[#allocation2 + $0x2] sm:$0x30] %vm659, %v664
    %v668 = vrot.slane %v649, 2
    %v670 = vmax.f32 %v649, %v668
    %671 = vst.msk [vmem:[#allocation2 + $0x8] sm:$0x3] %vm657, %v670
    %672 = vst.msk [vmem:[#allocation2 + $0x6] sm:$0x30] %vm659, %v670
    %v674 = vrot.slane %v650, 2
    %v676 = vmax.f32 %v650, %v674
    %677 = vst.msk [vmem:[#allocation2 + $0xc] sm:$0x3] %vm657, %v676
    %678 = vst.msk [vmem:[#allocation2 + $0xa] sm:$0x30] %vm659, %v676
    %v680 = vrot.slane %v651, 2
    %v682 = vmax.f32 %v651, %v680
    %683 = vst.msk [vmem:[#allocation2 + $0x10] sm:$0x3] %vm657, %v682
    %684 = vst.msk [vmem:[#allocation2 + $0xe] sm:$0x30] %vm659, %v682
    %v686 = vrot.slane %v652, 2
    %v688 = vmax.f32 %v652, %v686
    %689 = vst.msk [vmem:[#allocation2 + $0x14] sm:$0x3] %vm657, %v688
    %690 = vst.msk [vmem:[#allocation2 + $0x12] sm:$0x30] %vm659, %v688
    %v691 = vld [vmem:[#allocation2] sm:$0xff]
    %v692 = vld [vmem:[#allocation2 + $0x8] sm:$0xff]
    %v693 = vld [vmem:[%s4] sm:$0xff]
    %v694 = vld [vmem:[%s4 + $0x8] sm:$0xff]
    %v695 = vld [vmem:[%s4 + $0x10] sm:$0xff]
    %v696 = vld [vmem:[%s4 + $0x18] sm:$0xff]
    %v697 = vld [vmem:[%s4 + $0x20] sm:$0xff]
    %v698 = vld [vmem:[%s4 + $0x28] sm:$0xff]
    %v699 = vld [vmem:[%s4 + $0x30] sm:$0xff]
    %v700 = vld [vmem:[%s4 + $0x38] sm:$0xff]
    %v701 = vld [vmem:[%s4 + $0x40] sm:$0xff]
    %v702 = vld [vmem:[%s5] sm:$0xff]
    %v703 = vld [vmem:[%s5 + $0x8] sm:$0xff]
    %v704 = vld [vmem:[%s5 + $0x10] sm:$0xff]
    %v705 = vld [vmem:[%s5 + $0x18] sm:$0xff]
    %v706 = vld [vmem:[%s5 + $0x20] sm:$0xff]
    %v707 = vld [vmem:[%s5 + $0x28] sm:$0xff]
    %v708 = vld [vmem:[%s5 + $0x30] sm:$0xff]
    %v709 = vld [vmem:[%s5 + $0x38] sm:$0xff]
    %v710 = vld [vmem:[%s5 + $0x40] sm:$0xff]
    %v711 = vld [vmem:[#allocation2 + $0x2] sm:$0xff]
    %v712 = vld [vmem:[#allocation2 + $0xa] sm:$0xff]
    %s713 = scalar_lea.vmem %s4, 72
    %v714 = vld [vmem:[%s713] sm:$0xff]
    %v715 = vld [vmem:[%s713 + $0x8] sm:$0xff]
    %v716 = vld [vmem:[%s713 + $0x10] sm:$0xff]
    %v717 = vld [vmem:[%s713 + $0x18] sm:$0xff]
    %v718 = vld [vmem:[%s713 + $0x20] sm:$0xff]
    %v719 = vld [vmem:[%s713 + $0x28] sm:$0xff]
    %v720 = vld [vmem:[%s713 + $0x30] sm:$0xff]
    %v721 = vld [vmem:[%s713 + $0x38] sm:$0xff]
    %v722 = vld [vmem:[%s713 + $0x40] sm:$0xff]
    %vm723 = vcmask 588800
    %v725 = vsel %vm723, %v711, 0
    %v728 = vsel %vm723, %v712, 0
    %730 = vmatpush.msra.mxu0 0.0
    %731 = vmatpush.msra.mxu0 0.0
    %732 = vmatpush.msra.mxu0 0.0
    %733 = vmatpush.msra.mxu0 0.0
    %734 = vmatpush.msra.mxu0 0.0
    %735 = vmatpush.msra.mxu0 0.0
    %736 = vmatpush.msra.mxu0 0.0
    %737 = vmatpush.msra.mxu0 %v722
    %738 = vmatpush.msra.mxu0 %v721
    %739 = vmatpush.msra.mxu0 %v720
    %740 = vmatpush.msra.mxu0 %v719
    %741 = vmatpush.msra.mxu0 %v718
    %742 = vmatpush.msra.mxu0 %v717
    %743 = vmatpush.msra.mxu0 %v716
    %744 = vmatpush.msra.mxu0 %v715
    %745 = vmatpush.msra.mxu0 %v714
    %746 = vmatmul.f32.gmra.mxu0 %v725
    %v747 = vpop.f32.mrf.mxu0
    %v748 = vadd.f32 0.0, %v747
    %749 = vmatmul.f32.gmra.mxu0 %v728
    %v750 = vpop.f32.mrf.mxu0
    %v751 = vadd.f32 0.0, %v750
    %752 = vdwg.mxu0
    %s753 = scalar_lea.vmem %s5, 72
    %v754 = vld [vmem:[%s753] sm:$0xff]
    %v755 = vld [vmem:[%s753 + $0x8] sm:$0xff]
    %v756 = vld [vmem:[%s753 + $0x10] sm:$0xff]
    %v757 = vld [vmem:[%s753 + $0x18] sm:$0xff]
    %v758 = vld [vmem:[%s753 + $0x20] sm:$0xff]
    %v759 = vld [vmem:[%s753 + $0x28] sm:$0xff]
    %v760 = vld [vmem:[%s753 + $0x30] sm:$0xff]
    %v761 = vld [vmem:[%s753 + $0x38] sm:$0xff]
    %v762 = vld [vmem:[%s753 + $0x40] sm:$0xff]
    %763 = vmatpush.msra.mxu0 0.0
    %764 = vmatpush.msra.mxu0 0.0
    %765 = vmatpush.msra.mxu0 0.0
    %766 = vmatpush.msra.mxu0 0.0
    %767 = vmatpush.msra.mxu0 0.0
    %768 = vmatpush.msra.mxu0 0.0
    %769 = vmatpush.msra.mxu0 0.0
    %770 = vmatpush.msra.mxu0 %v762
    %771 = vmatpush.msra.mxu0 %v761
    %772 = vmatpush.msra.mxu0 %v760
    %773 = vmatpush.msra.mxu0 %v759
    %774 = vmatpush.msra.mxu0 %v758
    %775 = vmatpush.msra.mxu0 %v757
    %776 = vmatpush.msra.mxu0 %v756
    %777 = vmatpush.msra.mxu0 %v755
    %778 = vmatpush.msra.mxu0 %v754
    %779 = vmatmul.f32.gmra.mxu0 %v725
    %v780 = vpop.f32.mrf.mxu0
    %v781 = vadd.f32 0.0, %v780
    %782 = vmatmul.f32.gmra.mxu0 %v728
    %v783 = vpop.f32.mrf.mxu0
    %v784 = vadd.f32 0.0, %v783
    %785 = vdwg.mxu0
    %v787 = vsel %vm723, %v691, 0
    %v790 = vsel %vm723, %v692, 0
    %792 = vmatpush.msra.mxu0 0.0
    %793 = vmatpush.msra.mxu0 0.0
    %794 = vmatpush.msra.mxu0 0.0
    %795 = vmatpush.msra.mxu0 0.0
    %796 = vmatpush.msra.mxu0 0.0
    %797 = vmatpush.msra.mxu0 0.0
    %798 = vmatpush.msra.mxu0 0.0
    %799 = vmatpush.msra.mxu0 %v701
    %800 = vmatpush.msra.mxu0 %v700
    %801 = vmatpush.msra.mxu0 %v699
    %802 = vmatpush.msra.mxu0 %v698
    %803 = vmatpush.msra.mxu0 %v697
    %804 = vmatpush.msra.mxu0 %v696
    %805 = vmatpush.msra.mxu0 %v695
    %806 = vmatpush.msra.mxu0 %v694
    %807 = vmatpush.msra.mxu0 %v693
    %808 = vmatmul.f32.gmra.mxu0 %v787
    %v809 = vpop.f32.mrf.mxu0
    %v810 = vadd.f32 %v748, %v809
    %811 = vmatmul.f32.gmra.mxu0 %v790
    %v812 = vpop.f32.mrf.mxu0
    %v813 = vadd.f32 %v751, %v812
    %814 = vdwg.mxu0
    %815 = vmatpush.msra.mxu0 0.0
    %816 = vmatpush.msra.mxu0 0.0
    %817 = vmatpush.msra.mxu0 0.0
    %818 = vmatpush.msra.mxu0 0.0
    %819 = vmatpush.msra.mxu0 0.0
    %820 = vmatpush.msra.mxu0 0.0
    %821 = vmatpush.msra.mxu0 0.0
    %822 = vmatpush.msra.mxu0 %v710
    %823 = vmatpush.msra.mxu0 %v709
    %824 = vmatpush.msra.mxu0 %v708
    %825 = vmatpush.msra.mxu0 %v707
    %826 = vmatpush.msra.mxu0 %v706
    %827 = vmatpush.msra.mxu0 %v705
    %828 = vmatpush.msra.mxu0 %v704
    %829 = vmatpush.msra.mxu0 %v703
    %830 = vmatpush.msra.mxu0 %v702
    %831 = vmatmul.f32.gmra.mxu0 %v787
    %v832 = vpop.f32.mrf.mxu0
    %v833 = vadd.f32 %v781, %v832
    %834 = vmatmul.f32.gmra.mxu0 %v790
    %v835 = vpop.f32.mrf.mxu0
    %v836 = vadd.f32 %v784, %v835
    %837 = vdwg.mxu0
    %v838 = vld [vmem:[#allocation2 + $0x4] sm:$0xff]
    %v839 = vld [vmem:[#allocation2 + $0xc] sm:$0xff]
    %s840 = scalar_lea.vmem %s4, 144
    %v841 = vld [vmem:[%s840] sm:$0xff]
    %v842 = vld [vmem:[%s840 + $0x8] sm:$0xff]
    %v843 = vld [vmem:[%s840 + $0x10] sm:$0xff]
    %v844 = vld [vmem:[%s840 + $0x18] sm:$0xff]
    %v845 = vld [vmem:[%s840 + $0x20] sm:$0xff]
    %v846 = vld [vmem:[%s840 + $0x28] sm:$0xff]
    %v847 = vld [vmem:[%s840 + $0x30] sm:$0xff]
    %v848 = vld [vmem:[%s840 + $0x38] sm:$0xff]
    %v849 = vld [vmem:[%s840 + $0x40] sm:$0xff]
    %v851 = vsel %vm723, %v838, 0
    %v854 = vsel %vm723, %v839, 0
    %856 = vmatpush.msra.mxu0 0.0
    %857 = vmatpush.msra.mxu0 0.0
    %858 = vmatpush.msra.mxu0 0.0
    %859 = vmatpush.msra.mxu0 0.0
    %860 = vmatpush.msra.mxu0 0.0
    %861 = vmatpush.msra.mxu0 0.0
    %862 = vmatpush.msra.mxu0 0.0
    %863 = vmatpush.msra.mxu0 %v849
    %864 = vmatpush.msra.mxu0 %v848
    %865 = vmatpush.msra.mxu0 %v847
    %866 = vmatpush.msra.mxu0 %v846
    %867 = vmatpush.msra.mxu0 %v845
    %868 = vmatpush.msra.mxu0 %v844
    %869 = vmatpush.msra.mxu0 %v843
    %870 = vmatpush.msra.mxu0 %v842
    %871 = vmatpush.msra.mxu0 %v841
    %872 = vmatmul.f32.gmra.mxu0 %v851
    %v873 = vpop.f32.mrf.mxu0
    %v874 = vadd.f32 0.0, %v873
    %875 = vmatmul.f32.gmra.mxu0 %v854
    %v876 = vpop.f32.mrf.mxu0
    %v877 = vadd.f32 0.0, %v876
    %878 = vdwg.mxu0
    %s879 = scalar_lea.vmem %s5, 144
    %v880 = vld [vmem:[%s879] sm:$0xff]
    %v881 = vld [vmem:[%s879 + $0x8] sm:$0xff]
    %v882 = vld [vmem:[%s879 + $0x10] sm:$0xff]
    %v883 = vld [vmem:[%s879 + $0x18] sm:$0xff]
    %v884 = vld [vmem:[%s879 + $0x20] sm:$0xff]
    %v885 = vld [vmem:[%s879 + $0x28] sm:$0xff]
    %v886 = vld [vmem:[%s879 + $0x30] sm:$0xff]
    %v887 = vld [vmem:[%s879 + $0x38] sm:$0xff]
    %v888 = vld [vmem:[%s879 + $0x40] sm:$0xff]
    %889 = vmatpush.msra.mxu0 0.0
    %890 = vmatpush.msra.mxu0 0.0
    %891 = vmatpush.msra.mxu0 0.0
    %892 = vmatpush.msra.mxu0 0.0
    %893 = vmatpush.msra.mxu0 0.0
    %894 = vmatpush.msra.mxu0 0.0
    %895 = vmatpush.msra.mxu0 0.0
    %896 = vmatpush.msra.mxu0 %v888
    %897 = vmatpush.msra.mxu0 %v887
    %898 = vmatpush.msra.mxu0 %v886
    %899 = vmatpush.msra.mxu0 %v885
    %900 = vmatpush.msra.mxu0 %v884
    %901 = vmatpush.msra.mxu0 %v883
    %902 = vmatpush.msra.mxu0 %v882
    %903 = vmatpush.msra.mxu0 %v881
    %904 = vmatpush.msra.mxu0 %v880
    %905 = vmatmul.f32.gmra.mxu0 %v851
    %v906 = vpop.f32.mrf.mxu0
    %v907 = vadd.f32 0.0, %v906
    %908 = vmatmul.f32.gmra.mxu0 %v854
    %v909 = vpop.f32.mrf.mxu0
    %v910 = vadd.f32 0.0, %v909
    %911 = vdwg.mxu0
    %v912 = vadd.f32 %v810, %v874
    %v913 = vadd.f32 %v813, %v877
    %v914 = vadd.f32 %v833, %v907
    %v915 = vadd.f32 %v836, %v910
    %v916 = vld [vmem:[#allocation2 + $0x6] sm:$0xff]
    %v917 = vld [vmem:[#allocation2 + $0xe] sm:$0xff]
    %s918 = scalar_lea.vmem %s4, 216
    %v919 = vld [vmem:[%s918] sm:$0xff]
    %v920 = vld [vmem:[%s918 + $0x8] sm:$0xff]
    %v921 = vld [vmem:[%s918 + $0x10] sm:$0xff]
    %v922 = vld [vmem:[%s918 + $0x18] sm:$0xff]
    %v923 = vld [vmem:[%s918 + $0x20] sm:$0xff]
    %v924 = vld [vmem:[%s918 + $0x28] sm:$0xff]
    %v925 = vld [vmem:[%s918 + $0x30] sm:$0xff]
    %v926 = vld [vmem:[%s918 + $0x38] sm:$0xff]
    %v927 = vld [vmem:[%s918 + $0x40] sm:$0xff]
    %v929 = vsel %vm723, %v916, 0
    %v932 = vsel %vm723, %v917, 0
    %934 = vmatpush.msra.mxu0 0.0
    %935 = vmatpush.msra.mxu0 0.0
    %936 = vmatpush.msra.mxu0 0.0
    %937 = vmatpush.msra.mxu0 0.0
    %938 = vmatpush.msra.mxu0 0.0
    %939 = vmatpush.msra.mxu0 0.0
    %940 = vmatpush.msra.mxu0 0.0
    %941 = vmatpush.msra.mxu0 %v927
    %942 = vmatpush.msra.mxu0 %v926
    %943 = vmatpush.msra.mxu0 %v925
    %944 = vmatpush.msra.mxu0 %v924
    %945 = vmatpush.msra.mxu0 %v923
    %946 = vmatpush.msra.mxu0 %v922
    %947 = vmatpush.msra.mxu0 %v921
    %948 = vmatpush.msra.mxu0 %v920
    %949 = vmatpush.msra.mxu0 %v919
    %950 = vmatmul.f32.gmra.mxu0 %v929
    %v951 = vpop.f32.mrf.mxu0
    %v952 = vadd.f32 0.0, %v951
    %953 = vmatmul.f32.gmra.mxu0 %v932
    %v954 = vpop.f32.mrf.mxu0
    %v955 = vadd.f32 0.0, %v954
    %956 = vdwg.mxu0
    %s957 = scalar_lea.vmem %s5, 216
    %v958 = vld [vmem:[%s957] sm:$0xff]
    %v959 = vld [vmem:[%s957 + $0x8] sm:$0xff]
    %v960 = vld [vmem:[%s957 + $0x10] sm:$0xff]
    %v961 = vld [vmem:[%s957 + $0x18] sm:$0xff]
    %v962 = vld [vmem:[%s957 + $0x20] sm:$0xff]
    %v963 = vld [vmem:[%s957 + $0x28] sm:$0xff]
    %v964 = vld [vmem:[%s957 + $0x30] sm:$0xff]
    %v965 = vld [vmem:[%s957 + $0x38] sm:$0xff]
    %v966 = vld [vmem:[%s957 + $0x40] sm:$0xff]
    %967 = vmatpush.msra.mxu0 0.0
    %968 = vmatpush.msra.mxu0 0.0
    %969 = vmatpush.msra.mxu0 0.0
    %970 = vmatpush.msra.mxu0 0.0
    %971 = vmatpush.msra.mxu0 0.0
    %972 = vmatpush.msra.mxu0 0.0
    %973 = vmatpush.msra.mxu0 0.0
    %974 = vmatpush.msra.mxu0 %v966
    %975 = vmatpush.msra.mxu0 %v965
    %976 = vmatpush.msra.mxu0 %v964
    %977 = vmatpush.msra.mxu0 %v963
    %978 = vmatpush.msra.mxu0 %v962
    %979 = vmatpush.msra.mxu0 %v961
    %980 = vmatpush.msra.mxu0 %v960
    %981 = vmatpush.msra.mxu0 %v959
    %982 = vmatpush.msra.mxu0 %v958
    %983 = vmatmul.f32.gmra.mxu0 %v929
    %v984 = vpop.f32.mrf.mxu0
    %v985 = vadd.f32 0.0, %v984
    %986 = vmatmul.f32.gmra.mxu0 %v932
    %v987 = vpop.f32.mrf.mxu0
    %v988 = vadd.f32 0.0, %v987
    %989 = vdwg.mxu0
    %v990 = vadd.f32 %v912, %v952
    %v991 = vadd.f32 %v913, %v955
    %v992 = vadd.f32 %v914, %v985
    %v993 = vadd.f32 %v915, %v988
    %v994 = vld [vmem:[#allocation2 + $0x8] sm:$0xff]
    %v995 = vld [vmem:[#allocation2 + $0x10] sm:$0xff]
    %s996 = scalar_lea.vmem %s4, 288
    %v997 = vld [vmem:[%s996] sm:$0xff]
    %v998 = vld [vmem:[%s996 + $0x8] sm:$0xff]
    %v999 = vld [vmem:[%s996 + $0x10] sm:$0xff]
    %v1000 = vld [vmem:[%s996 + $0x18] sm:$0xff]
    %v1001 = vld [vmem:[%s996 + $0x20] sm:$0xff]
    %v1002 = vld [vmem:[%s996 + $0x28] sm:$0xff]
    %v1003 = vld [vmem:[%s996 + $0x30] sm:$0xff]
    %v1004 = vld [vmem:[%s996 + $0x38] sm:$0xff]
    %v1005 = vld [vmem:[%s996 + $0x40] sm:$0xff]
    %v1007 = vsel %vm723, %v994, 0
    %v1010 = vsel %vm723, %v995, 0
    %1012 = vmatpush.msra.mxu0 0.0
    %1013 = vmatpush.msra.mxu0 0.0
    %1014 = vmatpush.msra.mxu0 0.0
    %1015 = vmatpush.msra.mxu0 0.0
    %1016 = vmatpush.msra.mxu0 0.0
    %1017 = vmatpush.msra.mxu0 0.0
    %1018 = vmatpush.msra.mxu0 0.0
    %1019 = vmatpush.msra.mxu0 %v1005
    %1020 = vmatpush.msra.mxu0 %v1004
    %1021 = vmatpush.msra.mxu0 %v1003
    %1022 = vmatpush.msra.mxu0 %v1002
    %1023 = vmatpush.msra.mxu0 %v1001
    %1024 = vmatpush.msra.mxu0 %v1000
    %1025 = vmatpush.msra.mxu0 %v999
    %1026 = vmatpush.msra.mxu0 %v998
    %1027 = vmatpush.msra.mxu0 %v997
    %1028 = vmatmul.f32.gmra.mxu0 %v1007
    %v1029 = vpop.f32.mrf.mxu0
    %v1030 = vadd.f32 0.0, %v1029
    %1031 = vmatmul.f32.gmra.mxu0 %v1010
    %v1032 = vpop.f32.mrf.mxu0
    %v1033 = vadd.f32 0.0, %v1032
    %1034 = vdwg.mxu0
    %s1035 = scalar_lea.vmem %s5, 288
    %v1036 = vld [vmem:[%s1035] sm:$0xff]
    %v1037 = vld [vmem:[%s1035 + $0x8] sm:$0xff]
    %v1038 = vld [vmem:[%s1035 + $0x10] sm:$0xff]
    %v1039 = vld [vmem:[%s1035 + $0x18] sm:$0xff]
    %v1040 = vld [vmem:[%s1035 + $0x20] sm:$0xff]
    %v1041 = vld [vmem:[%s1035 + $0x28] sm:$0xff]
    %v1042 = vld [vmem:[%s1035 + $0x30] sm:$0xff]
    %v1043 = vld [vmem:[%s1035 + $0x38] sm:$0xff]
    %v1044 = vld [vmem:[%s1035 + $0x40] sm:$0xff]
    %1045 = vmatpush.msra.mxu0 0.0
    %1046 = vmatpush.msra.mxu0 0.0
    %1047 = vmatpush.msra.mxu0 0.0
    %1048 = vmatpush.msra.mxu0 0.0
    %1049 = vmatpush.msra.mxu0 0.0
    %1050 = vmatpush.msra.mxu0 0.0
    %1051 = vmatpush.msra.mxu0 0.0
    %1052 = vmatpush.msra.mxu0 %v1044
    %1053 = vmatpush.msra.mxu0 %v1043
    %1054 = vmatpush.msra.mxu0 %v1042
    %1055 = vmatpush.msra.mxu0 %v1041
    %1056 = vmatpush.msra.mxu0 %v1040
    %1057 = vmatpush.msra.mxu0 %v1039
    %1058 = vmatpush.msra.mxu0 %v1038
    %1059 = vmatpush.msra.mxu0 %v1037
    %1060 = vmatpush.msra.mxu0 %v1036
    %1061 = vmatmul.f32.gmra.mxu0 %v1007
    %v1062 = vpop.f32.mrf.mxu0
    %v1063 = vadd.f32 0.0, %v1062
    %1064 = vmatmul.f32.gmra.mxu0 %v1010
    %v1065 = vpop.f32.mrf.mxu0
    %v1066 = vadd.f32 0.0, %v1065
    %1067 = vdwg.mxu0
    %v1068 = vadd.f32 %v990, %v1030
    %v1069 = vadd.f32 %v991, %v1033
    %v1070 = vadd.f32 %v992, %v1063
    %v1071 = vadd.f32 %v993, %v1066
    %v1072 = vmax.f32 %v1068, %v1070
    %v1073 = vmax.f32 %v1069, %v1071
    %v1074 = vld [vmem:[%s6] sm:$0x1]
    %v1076 = vperm.slane %v1074, 0
    %v1078 = vadd.f32 %v1072, %v1076
    %v1079 = vadd.f32 %v1073, %v1076
    %v1080 = vmax.f32 %v1078, 0.0
    %v1081 = vmax.f32 %v1079, 0.0
    %v1083 = vrot.slane %v1080, 2
    %v1085 = vmax.f32 %v1080, %v1083
    %v1086 = vld [vmem:[%s7] sm:$0xff]
    %v1087 = vld [vmem:[%s7 + $0x8] sm:$0xff]
    %v1088 = vld [vmem:[%s7 + $0x10] sm:$0xff]
    %v1089 = vld [vmem:[%s7 + $0x18] sm:$0xff]
    %v1090 = vld [vmem:[%s7 + $0x20] sm:$0xff]
    %v1091 = vld [vmem:[%s7 + $0x28] sm:$0xff]
    %v1092 = vld [vmem:[%s7 + $0x30] sm:$0xff]
    %v1093 = vld [vmem:[%s7 + $0x38] sm:$0xff]
    %s1094 = scalar_lea.vmem %s7, 64
    %v1095 = vld [vmem:[%s1094] sm:$0xff]
    %v1096 = vld [vmem:[%s1094 + $0x8] sm:$0xff]
    %v1097 = vld [vmem:[%s1094 + $0x10] sm:$0xff]
    %v1098 = vld [vmem:[%s1094 + $0x18] sm:$0xff]
    %v1099 = vld [vmem:[%s1094 + $0x20] sm:$0xff]
    %v1100 = vld [vmem:[%s1094 + $0x28] sm:$0xff]
    %v1101 = vld [vmem:[%s1094 + $0x30] sm:$0xff]
    %v1102 = vld [vmem:[%s1094 + $0x38] sm:$0xff]
    %v1104 = vrot.slane %v1085, 4
    %vm1105 = vcmask 523264
    %v1106 = vsel %vm1105, %v1104, 0
    %1108 = vmatpush.msra.mxu0 0.0
    %1109 = vmatpush.msra.mxu0 0.0
    %1110 = vmatpush.msra.mxu0 0.0
    %1111 = vmatpush.msra.mxu0 0.0
    %1112 = vmatpush.msra.mxu0 0.0
    %1113 = vmatpush.msra.mxu0 0.0
    %1114 = vmatpush.msra.mxu0 0.0
    %1115 = vmatpush.msra.mxu0 0.0
    %1116 = vmatpush.msra.mxu0 %v1102
    %1117 = vmatpush.msra.mxu0 %v1101
    %1118 = vmatpush.msra.mxu0 %v1100
    %1119 = vmatpush.msra.mxu0 %v1099
    %1120 = vmatpush.msra.mxu0 %v1098
    %1121 = vmatpush.msra.mxu0 %v1097
    %1122 = vmatpush.msra.mxu0 %v1096
    %1123 = vmatpush.msra.mxu0 %v1095
    %1124 = vmatmul.f32.gmra.mxu0 %v1106
    %v1125 = vpop.f32.mrf.mxu0
    %v1126 = vadd.f32 0.0, %v1125
    %1127 = vdwg.mxu0
    %v1128 = vsel %vm1105, %v1085, 0
    %1130 = vmatpush.msra.mxu0 0.0
    %1131 = vmatpush.msra.mxu0 0.0
    %1132 = vmatpush.msra.mxu0 0.0
    %1133 = vmatpush.msra.mxu0 0.0
    %1134 = vmatpush.msra.mxu0 0.0
    %1135 = vmatpush.msra.mxu0 0.0
    %1136 = vmatpush.msra.mxu0 0.0
    %1137 = vmatpush.msra.mxu0 0.0
    %1138 = vmatpush.msra.mxu0 %v1093
    %1139 = vmatpush.msra.mxu0 %v1092
    %1140 = vmatpush.msra.mxu0 %v1091
    %1141 = vmatpush.msra.mxu0 %v1090
    %1142 = vmatpush.msra.mxu0 %v1089
    %1143 = vmatpush.msra.mxu0 %v1088
    %1144 = vmatpush.msra.mxu0 %v1087
    %1145 = vmatpush.msra.mxu0 %v1086
    %1146 = vmatmul.f32.gmra.mxu0 %v1128
    %v1147 = vpop.f32.mrf.mxu0
    %v1148 = vadd.f32 %v1126, %v1147
    %1149 = vdwg.mxu0
    %v1151 = vrot.slane %v1081, 2
    %v1153 = vmax.f32 %v1081, %v1151
    %s1154 = scalar_lea.vmem %s7, 128
    %v1155 = vld [vmem:[%s1154] sm:$0xff]
    %v1156 = vld [vmem:[%s1154 + $0x8] sm:$0xff]
    %v1157 = vld [vmem:[%s1154 + $0x10] sm:$0xff]
    %v1158 = vld [vmem:[%s1154 + $0x18] sm:$0xff]
    %v1159 = vld [vmem:[%s1154 + $0x20] sm:$0xff]
    %v1160 = vld [vmem:[%s1154 + $0x28] sm:$0xff]
    %v1161 = vld [vmem:[%s1154 + $0x30] sm:$0xff]
    %v1162 = vld [vmem:[%s1154 + $0x38] sm:$0xff]
    %v1164 = vsel %vm1105, %v1153, 0
    %1166 = vmatpush.msra.mxu0 0.0
    %1167 = vmatpush.msra.mxu0 0.0
    %1168 = vmatpush.msra.mxu0 0.0
    %1169 = vmatpush.msra.mxu0 0.0
    %1170 = vmatpush.msra.mxu0 0.0
    %1171 = vmatpush.msra.mxu0 0.0
    %1172 = vmatpush.msra.mxu0 0.0
    %1173 = vmatpush.msra.mxu0 0.0
    %1174 = vmatpush.msra.mxu0 %v1162
    %1175 = vmatpush.msra.mxu0 %v1161
    %1176 = vmatpush.msra.mxu0 %v1160
    %1177 = vmatpush.msra.mxu0 %v1159
    %1178 = vmatpush.msra.mxu0 %v1158
    %1179 = vmatpush.msra.mxu0 %v1157
    %1180 = vmatpush.msra.mxu0 %v1156
    %1181 = vmatpush.msra.mxu0 %v1155
    %1182 = vmatmul.f32.gmra.mxu0 %v1164
    %v1183 = vpop.f32.mrf.mxu0
    %v1184 = vadd.f32 0.0, %v1183
    %1185 = vdwg.mxu0
    %v1186 = vadd.f32 %v1148, %v1184
    %s1187 = scalar_lea.vmem %s7, 192
    %v1188 = vld [vmem:[%s1187] sm:$0xff]
    %v1189 = vld [vmem:[%s1187 + $0x8] sm:$0xff]
    %v1190 = vld [vmem:[%s1187 + $0x10] sm:$0xff]
    %v1191 = vld [vmem:[%s1187 + $0x18] sm:$0xff]
    %v1192 = vld [vmem:[%s1187 + $0x20] sm:$0xff]
    %v1193 = vld [vmem:[%s1187 + $0x28] sm:$0xff]
    %v1194 = vld [vmem:[%s1187 + $0x30] sm:$0xff]
    %v1195 = vld [vmem:[%s1187 + $0x38] sm:$0xff]
    %v1196 = vrot.slane %v1153, 4
    %v1197 = vsel %vm1105, %v1196, 0
    %1199 = vmatpush.msra.mxu0 0.0
    %1200 = vmatpush.msra.mxu0 0.0
    %1201 = vmatpush.msra.mxu0 0.0
    %1202 = vmatpush.msra.mxu0 0.0
    %1203 = vmatpush.msra.mxu0 0.0
    %1204 = vmatpush.msra.mxu0 0.0
    %1205 = vmatpush.msra.mxu0 0.0
    %1206 = vmatpush.msra.mxu0 0.0
    %1207 = vmatpush.msra.mxu0 %v1195
    %1208 = vmatpush.msra.mxu0 %v1194
    %1209 = vmatpush.msra.mxu0 %v1193
    %1210 = vmatpush.msra.mxu0 %v1192
    %1211 = vmatpush.msra.mxu0 %v1191
    %1212 = vmatpush.msra.mxu0 %v1190
    %1213 = vmatpush.msra.mxu0 %v1189
    %1214 = vmatpush.msra.mxu0 %v1188
    %1215 = vmatmul.f32.gmra.mxu0 %v1197
    %v1216 = vpop.f32.mrf.mxu0
    %v1217 = vadd.f32 0.0, %v1216
    %1218 = vdwg.mxu0
    %v1219 = vadd.f32 %v1186, %v1217
    %v1220 = vld [vmem:[%s8] sm:$0x1]
    %v1222 = vperm.slane %v1220, 0
    %v1224 = vadd.f32 %v1219, %v1222
    %v1225 = vmax.f32 %v1224, 0.0
    %v1226 = vld [vmem:[%s9] sm:$0xff]
    %v1227 = vld [vmem:[%s9 + $0x8] sm:$0xff]
    %v1228 = vld [vmem:[%s9 + $0x10] sm:$0xff]
    %v1229 = vld [vmem:[%s9 + $0x18] sm:$0xff]
    %v1230 = vld [vmem:[%s10] sm:$0x1]
    %v1232 = vperm.slane %v1230, 0
    %vm1234 = vcmask 261120
    %v1236 = vsel %vm1234, %v1225, 0
    %1238 = vmatpush.msra.mxu0 0.0
    %1239 = vmatpush.msra.mxu0 0.0
    %1240 = vmatpush.msra.mxu0 0.0
    %1241 = vmatpush.msra.mxu0 0.0
    %1242 = vmatpush.msra.mxu0 0.0
    %1243 = vmatpush.msra.mxu0 0.0
    %1244 = vmatpush.msra.mxu0 0.0
    %1245 = vmatpush.msra.mxu0 0.0
    %1246 = vmatpush.msra.mxu0 0.0
    %1247 = vmatpush.msra.mxu0 0.0
    %1248 = vmatpush.msra.mxu0 0.0
    %1249 = vmatpush.msra.mxu0 0.0
    %1250 = vmatpush.msra.mxu0 %v1229
    %1251 = vmatpush.msra.mxu0 %v1228
    %1252 = vmatpush.msra.mxu0 %v1227
    %1253 = vmatpush.msra.mxu0 %v1226
    %1254 = vmatmul.f32.gmra.mxu0 %v1236
    %v1255 = vpop.f32.mrf.mxu0
    %v1256 = vadd.f32 %v1232, %v1255
    %1257 = vdwg.mxu0
    %v1258 = vmax.f32 %v1256, 0.0
    %v1259 = vld [vmem:[%s11] sm:$0xff]
    %v1260 = vld [vmem:[%s11 + $0x8] sm:$0xff]
    %v1261 = vld [vmem:[%s12] sm:$0x1]
    %v1263 = vperm.slane %v1261, 0
    %vm1265 = vcmask 130048
    %v1267 = vsel %vm1265, %v1258, 0
    %1269 = vmatpush.msra.mxu0 0.0
    %1270 = vmatpush.msra.mxu0 0.0
    %1271 = vmatpush.msra.mxu0 0.0
    %1272 = vmatpush.msra.mxu0 0.0
    %1273 = vmatpush.msra.mxu0 0.0
    %1274 = vmatpush.msra.mxu0 0.0
    %1275 = vmatpush.msra.mxu0 0.0
    %1276 = vmatpush.msra.mxu0 0.0
    %1277 = vmatpush.msra.mxu0 0.0
    %1278 = vmatpush.msra.mxu0 0.0
    %1279 = vmatpush.msra.mxu0 0.0
    %1280 = vmatpush.msra.mxu0 0.0
    %1281 = vmatpush.msra.mxu0 0.0
    %1282 = vmatpush.msra.mxu0 0.0
    %1283 = vmatpush.msra.mxu0 %v1260
    %1284 = vmatpush.msra.mxu0 %v1259
    %1285 = vmatmul.f32.gmra.mxu0 %v1267
    %v1286 = vpop.f32.mrf.mxu0
    %v1287 = vadd.f32 %v1263, %v1286
    %1288 = vdwg.mxu0
    %vm1289 = vcmask 74752
    %1290 = vst.msk [vmem:[#allocation3] sm:$0x3] %vm1289, %v1287
    // Predicated region
    $region54: #{forward.1} parent=1 // pred_check
      _
    $region55: #{forward.1} parent=1 // pred_check_branch
      %1292 = sbr.rel (0) target = $region57
    $region56: #{forward.1} parent=1 // pred_region
      %1294 = vsyncadd [#allocation4], 0
      %s1296 = sshll.u32 [#allocation3], 4
      %s1297 = int_to_ptr.vmem [resolvable:$true] %s1296
      %s1298 = sshll.u32 %s13, 4
      %s1299 = int_to_ptr.hbm [resolvable:$true] %s1298
      %1301 = dma.vmem_to_hbm [thread:$0]  %s1297, 32, %s1299, [#allocation4]
    $region57: #{forward.1} parent=1 // pred_fallthru
      _
    // Predicated region
    $region58: #{forward.1} parent=1 // pred_check
      _
    $region59: #{forward.1} parent=1 // pred_check_branch
      %1303 = sbr.rel (0) target = $region61
    $region60: #{forward.1} parent=1 // pred_region
      %1305 = dma.done [#allocation4], 32
    $region61: #{forward.1} parent=1 // pred_fallthru
      _
    %1306 = vsyncpa [#allocation4], 1

</llo_original>
